<compile_context>
chip_gen: v7x
topology: tpu7x:2x2x1
jax: 0.10.0
libtpu: 0.0.40
codegen_flags: <defaults>
</compile_context>

<pallas_src>
import jax
import jax.numpy as jnp
from jax.experimental import pallas as pl
from jax.experimental.pallas import tpu as pltpu

IMG = 128

# (top, left, H, W) placements, derived from the F.pad arguments in the
# PyTorch forward:
#   left eye : pad (L=18, R=70, T=19, B=69)  -> rows 19..58,  cols 18..57
#   right eye: pad (L=65, R=23, T=18, B=70)  -> rows 18..57,  cols 65..104
#   nose     : pad (L=43, R=45, T=47, B=49)  -> rows 47..78,  cols 43..82
#   mouth    : pad (L=40, R=40, T=72, B=24)  -> rows 72..103, cols 40..87
_PLACES = (
    ("left_eye",  (19, 18, 40, 40)),
    ("right_eye", (18, 65, 40, 40)),
    ("nose",      (47, 43, 32, 40)),
    ("mouth",     (72, 40, 32, 48)),
)


def _round_up(x, m):
    return ((x + m - 1) // m) * m


def _aligned_rows(top, h):
    """8-row-aligned band enclosing rows [top, top+h)."""
    return (top // 8) * 8, _round_up(top + h, 8)


def _pad_full_lanes(x, row_pad, col_pad, dtype):
    """Zero-extend a (P, h, w) block to (P, h + sum(row_pad), 128) lanes.

    Uses jnp.concatenate with zeros (robustly supported by the Mosaic
    lowering) instead of jnp.pad.
    """
    p, h, _ = x.shape
    cl, cr = col_pad
    cols = []
    if cl:
        cols.append(jnp.zeros((p, h, cl), dtype))
    cols.append(x.astype(dtype))
    if cr:
        cols.append(jnp.zeros((p, h, cr), dtype))
    x = jnp.concatenate(cols, axis=2) if len(cols) > 1 else x.astype(dtype)

    rt, rb = row_pad
    rows = []
    if rt:
        rows.append(jnp.zeros((p, rt, IMG), dtype))
    rows.append(x)
    if rb:
        rows.append(jnp.zeros((p, rb, IMG), dtype))
    return jnp.concatenate(rows, axis=1) if len(rows) > 1 else x


def _local_fuser_kernel(le_ref, re_ref, no_ref, mo_ref, out_ref):
    # out_ref: (P, 128, 128); le/re: (P, 40, 40); nose: (P, 32, 40);
    # mouth: (P, 32, 48).
    feat_refs = (le_ref, re_ref, no_ref, mo_ref)
    p = out_ref.shape[0]
    dt = out_ref.dtype

    # Zero-extend every feature to full 128-lane rows over its 8-row-aligned
    # band (the lane shift happens once per feature, on the small array).
    padded = {}
    feat_bands = {}
    for (name, (top, left, h, w)), ref in zip(_PLACES, feat_refs):
        r0, r1 = _aligned_rows(top, h)
        padded[name] = _pad_full_lanes(
            ref[...],
            row_pad=(top - r0, r1 - (top + h)),
            col_pad=(left, IMG - (left + w)),
            dtype=dt,
        )
        feat_bands[name] = (r0, r1)

    # Partition the 128 output rows into disjoint 8-aligned bands (boundaries
    # at every feature band edge), and write each band exactly once: max over
    # the contributing padded features and an implicit zero (the zero base
    # realizes both the background and the clamp-at-zero of the reference).
    boundaries = sorted({0, IMG, *(r for b in feat_bands.values() for r in b)})
    for lo, hi in zip(boundaries[:-1], boundaries[1:]):
        band = jnp.zeros((p, hi - lo, IMG), dt)
        for name, (r0, r1) in feat_bands.items():
            if r0 <= lo and hi <= r1:
                band = jnp.maximum(band, padded[name][:, lo - r0:hi - r0, :])
        out_ref[:, lo:hi, :] = band


def local_fuser(f_left_eye, f_right_eye, f_nose, f_mouth,
                *, max_planes_per_block=64):
    """Pallas implementation of the landmark fuser forward. Inputs are NCHW."""
    N, C = f_left_eye.shape[:2]
    NC = N * C
    dtype = f_left_eye.dtype

    # Fuse N and C into one plane axis (free, contiguous reshape).
    le = f_left_eye.reshape(NC, *f_left_eye.shape[2:])
    re = f_right_eye.reshape(NC, *f_right_eye.shape[2:])
    no = f_nose.reshape(NC, *f_nose.shape[2:])
    mo = f_mouth.reshape(NC, *f_mouth.shape[2:])

    # Planes per grid step: cap at max_planes_per_block (64 default -> fits
    # v7x VMEM; 128 OK on v5e/v6e) and additionally shrink so the grid has
    # >= ~4 steps when NC allows it — otherwise there is no software
    # pipelining and nothing for the "parallel" axis / dual TCs to split.
    P = min(max_planes_per_block, NC)
    if NC > 8:
        P = min(P, max(8, _round_up(pl.cdiv(NC, 4), 8)))
    grid = (pl.cdiv(NC, P),)

    def in_spec(h, w):
        # Last two dims equal the full array extents -> always legal blocks.
        return pl.BlockSpec((P, h, w), lambda i: (i, 0, 0))

    out = pl.pallas_call(
        _local_fuser_kernel,
        out_shape=jax.ShapeDtypeStruct((NC, IMG, IMG), dtype),
        grid=grid,
        in_specs=[in_spec(40, 40), in_spec(40, 40),
                  in_spec(32, 40), in_spec(32, 48)],
        out_specs=pl.BlockSpec((P, IMG, IMG), lambda i: (i, 0, 0)),
        compiler_params=pltpu.CompilerParams(
            dimension_semantics=("parallel",),
            # P=64 f32: ~9 MiB inputs (lane-padded, double-buffered) + 8 MiB
            # output (double-buffered) + ~5.5 MiB in-kernel padded temporaries.
            vmem_limit_bytes=40 * 1024 * 1024,
        ),
    )(le, re, no, mo)

    return out.reshape(N, C, IMG, IMG)


def _local_fuser_reference(le, re, no, mo):
    """Pure-jnp reference matching the PyTorch forward exactly."""
    feats = dict(left_eye=le, right_eye=re, nose=no, mouth=mo)

    def pad(name):
        top, left, h, w = dict(_PLACES)[name]
        return jnp.pad(
            feats[name],
            ((0, 0), (0, 0), (top, IMG - top - h), (left, IMG - left - w)))

    canvases = jnp.stack([pad(name) for name, _ in _PLACES], axis=0)
    return jnp.max(canvases, axis=0)


if __name__ == "__main__":
    # The fuser has no learnable parameters; only inputs are needed.
    keys = jax.random.split(jax.random.PRNGKey(0), 8)

    def make_inputs(n, c, ks):
        return (jax.random.normal(ks[0], (n, c, 40, 40), dtype=jnp.float32),
                jax.random.normal(ks[1], (n, c, 40, 40), dtype=jnp.float32),
                jax.random.normal(ks[2], (n, c, 32, 40), dtype=jnp.float32),
                jax.random.normal(ks[3], (n, c, 32, 48), dtype=jnp.float32))

    # Primary small case (NC=8 -> single grid step).
    N, C = 2, 4
    inputs = make_inputs(N, C, keys[:4])
    out = jax.block_until_ready(local_fuser(*inputs))
    ref = _local_fuser_reference(*inputs)
    assert out.shape == (N, C, IMG, IMG)
    assert jnp.array_equal(out, ref), "mismatch vs reference (N=2, C=4)"

    # Multi-step grid with a partial tail block (NC=21 -> P=8, 3 steps, tail=5)
    # to exercise the pipelined path and boundary clipping.
    N2, C2 = 3, 7
    inputs2 = make_inputs(N2, C2, keys[4:])
    out2 = jax.block_until_ready(local_fuser(*inputs2))
    ref2 = _local_fuser_reference(*inputs2)
    assert out2.shape == (N2, C2, IMG, IMG)
    assert jnp.array_equal(out2, ref2), "mismatch vs reference (N=3, C=7)"

    print("KERNEL_OK")
</pallas_src>

<mosaic_0001>
module attributes {stable_mosaic.version = 11 : i64} {
  func.func @_local_fuser_kernel(%arg0: i32, %arg1: memref<8x40x40xf32, #tpu.memory_space<vmem>>, %arg2: memref<8x40x40xf32, #tpu.memory_space<vmem>>, %arg3: memref<8x32x40xf32, #tpu.memory_space<vmem>>, %arg4: memref<8x32x48xf32, #tpu.memory_space<vmem>>, %arg5: memref<8x128x128xf32, #tpu.memory_space<vmem>>) attributes {dimension_semantics = [#tpu.dimension_semantics<parallel>], iteration_bounds = array<i64: 1>, scalar_prefetch = 0 : i64, scratch_operands = 0 : i64, tpu.core_type = #tpu.core_type<tc>, window_params = [{transform_indices = @transform_0, window_bounds = array<i64: 8, 40, 40>}, {transform_indices = @transform_1, window_bounds = array<i64: 8, 40, 40>}, {transform_indices = @transform_2, window_bounds = array<i64: 8, 32, 40>}, {transform_indices = @transform_3, window_bounds = array<i64: 8, 32, 48>}, {transform_indices = @transform_4, window_bounds = array<i64: 8, 128, 128>}]} {
    %c0 = arith.constant 0 : index
    %c0_0 = arith.constant 0 : index
    %c0_1 = arith.constant 0 : index
    %0 = vector.load %arg1[%c0, %c0_0, %c0_1] : memref<8x40x40xf32, #tpu.memory_space<vmem>>, vector<8x40x40xf32>
    %cst = arith.constant 0.000000e+00 : f32
    %1 = vector.broadcast %cst : f32 to vector<8x40x18xf32>
    %cst_2 = arith.constant 0.000000e+00 : f32
    %2 = vector.broadcast %cst_2 : f32 to vector<8x40x70xf32>
    %3 = tpu.concatenate %1, %0, %2 in 2 : vector<8x40x18xf32>, vector<8x40x40xf32>, vector<8x40x70xf32> -> vector<8x40x128xf32>
    %cst_3 = arith.constant 0.000000e+00 : f32
    %4 = vector.broadcast %cst_3 : f32 to vector<8x3x128xf32>
    %cst_4 = arith.constant 0.000000e+00 : f32
    %5 = vector.broadcast %cst_4 : f32 to vector<8x5x128xf32>
    %6 = tpu.concatenate %4, %3, %5 in 1 : vector<8x3x128xf32>, vector<8x40x128xf32>, vector<8x5x128xf32> -> vector<8x48x128xf32>
    %c0_5 = arith.constant 0 : index
    %c0_6 = arith.constant 0 : index
    %c0_7 = arith.constant 0 : index
    %7 = vector.load %arg2[%c0_5, %c0_6, %c0_7] : memref<8x40x40xf32, #tpu.memory_space<vmem>>, vector<8x40x40xf32>
    %cst_8 = arith.constant 0.000000e+00 : f32
    %8 = vector.broadcast %cst_8 : f32 to vector<8x40x65xf32>
    %cst_9 = arith.constant 0.000000e+00 : f32
    %9 = vector.broadcast %cst_9 : f32 to vector<8x40x23xf32>
    %10 = tpu.concatenate %8, %7, %9 in 2 : vector<8x40x65xf32>, vector<8x40x40xf32>, vector<8x40x23xf32> -> vector<8x40x128xf32>
    %cst_10 = arith.constant 0.000000e+00 : f32
    %11 = vector.broadcast %cst_10 : f32 to vector<8x2x128xf32>
    %cst_11 = arith.constant 0.000000e+00 : f32
    %12 = vector.broadcast %cst_11 : f32 to vector<8x6x128xf32>
    %13 = tpu.concatenate %11, %10, %12 in 1 : vector<8x2x128xf32>, vector<8x40x128xf32>, vector<8x6x128xf32> -> vector<8x48x128xf32>
    %c0_12 = arith.constant 0 : index
    %c0_13 = arith.constant 0 : index
    %c0_14 = arith.constant 0 : index
    %14 = vector.load %arg3[%c0_12, %c0_13, %c0_14] : memref<8x32x40xf32, #tpu.memory_space<vmem>>, vector<8x32x40xf32>
    %cst_15 = arith.constant 0.000000e+00 : f32
    %15 = vector.broadcast %cst_15 : f32 to vector<8x32x43xf32>
    %cst_16 = arith.constant 0.000000e+00 : f32
    %16 = vector.broadcast %cst_16 : f32 to vector<8x32x45xf32>
    %17 = tpu.concatenate %15, %14, %16 in 2 : vector<8x32x43xf32>, vector<8x32x40xf32>, vector<8x32x45xf32> -> vector<8x32x128xf32>
    %cst_17 = arith.constant 0.000000e+00 : f32
    %18 = vector.broadcast %cst_17 : f32 to vector<8x7x128xf32>
    %cst_18 = arith.constant 0.000000e+00 : f32
    %19 = vector.broadcast %cst_18 : f32 to vector<8x1x128xf32>
    %20 = tpu.concatenate %18, %17, %19 in 1 : vector<8x7x128xf32>, vector<8x32x128xf32>, vector<8x1x128xf32> -> vector<8x40x128xf32>
    %c0_19 = arith.constant 0 : index
    %c0_20 = arith.constant 0 : index
    %c0_21 = arith.constant 0 : index
    %21 = vector.load %arg4[%c0_19, %c0_20, %c0_21] : memref<8x32x48xf32, #tpu.memory_space<vmem>>, vector<8x32x48xf32>
    %cst_22 = arith.constant 0.000000e+00 : f32
    %22 = vector.broadcast %cst_22 : f32 to vector<8x32x40xf32>
    %cst_23 = arith.constant 0.000000e+00 : f32
    %23 = vector.broadcast %cst_23 : f32 to vector<8x32x40xf32>
    %24 = tpu.concatenate %22, %21, %23 in 2 : vector<8x32x40xf32>, vector<8x32x48xf32>, vector<8x32x40xf32> -> vector<8x32x128xf32>
    %cst_24 = arith.constant 0.000000e+00 : f32
    %25 = vector.broadcast %cst_24 : f32 to vector<8x16x128xf32>
    %c0_25 = arith.constant 0 : index
    %c0_26 = arith.constant 0 : index
    %c0_27 = arith.constant 0 : index
    %26 = vector.load %arg5[%c0_25, %c0_26, %c0_27] : memref<8x128x128xf32, #tpu.memory_space<vmem>>, vector<8x16x128xf32>
    tpu.vector_store %arg5[%c0_25, %c0_26, %c0_27], %25 {strides = array<i32>} : memref<8x128x128xf32, #tpu.memory_space<vmem>>, vector<8x16x128xf32>,
    %cst_28 = arith.constant 0.000000e+00 : f32
    %27 = vector.broadcast %cst_28 : f32 to vector<8x24x128xf32>
    %28 = vector.extract_strided_slice %6 {offsets = [0, 0, 0], sizes = [8, 24, 128], strides = [1, 1, 1]} : vector<8x48x128xf32> to vector<8x24x128xf32>
    %29 = arith.maximumf %27, %28 : vector<8x24x128xf32>
    %30 = vector.extract_strided_slice %13 {offsets = [0, 0, 0], sizes = [8, 24, 128], strides = [1, 1, 1]} : vector<8x48x128xf32> to vector<8x24x128xf32>
    %31 = arith.maximumf %29, %30 : vector<8x24x128xf32>
    %c0_29 = arith.constant 0 : index
    %c16 = arith.constant 16 : index
    %c0_30 = arith.constant 0 : index
    %32 = vector.load %arg5[%c0_29, %c16, %c0_30] : memref<8x128x128xf32, #tpu.memory_space<vmem>>, vector<8x24x128xf32>
    tpu.vector_store %arg5[%c0_29, %c16, %c0_30], %31 {strides = array<i32>} : memref<8x128x128xf32, #tpu.memory_space<vmem>>, vector<8x24x128xf32>,
    %cst_31 = arith.constant 0.000000e+00 : f32
    %33 = vector.broadcast %cst_31 : f32 to vector<8x24x128xf32>
    %34 = vector.extract_strided_slice %6 {offsets = [0, 24, 0], sizes = [8, 24, 128], strides = [1, 1, 1]} : vector<8x48x128xf32> to vector<8x24x128xf32>
    %35 = arith.maximumf %33, %34 : vector<8x24x128xf32>
    %36 = vector.extract_strided_slice %13 {offsets = [0, 24, 0], sizes = [8, 24, 128], strides = [1, 1, 1]} : vector<8x48x128xf32> to vector<8x24x128xf32>
    %37 = arith.maximumf %35, %36 : vector<8x24x128xf32>
    %38 = vector.extract_strided_slice %20 {offsets = [0, 0, 0], sizes = [8, 24, 128], strides = [1, 1, 1]} : vector<8x40x128xf32> to vector<8x24x128xf32>
    %39 = arith.maximumf %37, %38 : vector<8x24x128xf32>
    %c0_32 = arith.constant 0 : index
    %c40 = arith.constant 40 : index
    %c0_33 = arith.constant 0 : index
    %40 = vector.load %arg5[%c0_32, %c40, %c0_33] : memref<8x128x128xf32, #tpu.memory_space<vmem>>, vector<8x24x128xf32>
    tpu.vector_store %arg5[%c0_32, %c40, %c0_33], %39 {strides = array<i32>} : memref<8x128x128xf32, #tpu.memory_space<vmem>>, vector<8x24x128xf32>,
    %cst_34 = arith.constant 0.000000e+00 : f32
    %41 = vector.broadcast %cst_34 : f32 to vector<8x8x128xf32>
    %42 = vector.extract_strided_slice %20 {offsets = [0, 24, 0], sizes = [8, 8, 128], strides = [1, 1, 1]} : vector<8x40x128xf32> to vector<8x8x128xf32>
    %43 = arith.maximumf %41, %42 : vector<8x8x128xf32>
    %c0_35 = arith.constant 0 : index
    %c64 = arith.constant 64 : index
    %c0_36 = arith.constant 0 : index
    %44 = vector.load %arg5[%c0_35, %c64, %c0_36] : memref<8x128x128xf32, #tpu.memory_space<vmem>>, vector<8x8x128xf32>
    tpu.vector_store %arg5[%c0_35, %c64, %c0_36], %43 {strides = array<i32>} : memref<8x128x128xf32, #tpu.memory_space<vmem>>, vector<8x8x128xf32>,
    %cst_37 = arith.constant 0.000000e+00 : f32
    %45 = vector.broadcast %cst_37 : f32 to vector<8x8x128xf32>
    %46 = vector.extract_strided_slice %20 {offsets = [0, 32, 0], sizes = [8, 8, 128], strides = [1, 1, 1]} : vector<8x40x128xf32> to vector<8x8x128xf32>
    %47 = arith.maximumf %45, %46 : vector<8x8x128xf32>
    %48 = vector.extract_strided_slice %24 {offsets = [0, 0, 0], sizes = [8, 8, 128], strides = [1, 1, 1]} : vector<8x32x128xf32> to vector<8x8x128xf32>
    %49 = arith.maximumf %47, %48 : vector<8x8x128xf32>
    %c0_38 = arith.constant 0 : index
    %c72 = arith.constant 72 : index
    %c0_39 = arith.constant 0 : index
    %50 = vector.load %arg5[%c0_38, %c72, %c0_39] : memref<8x128x128xf32, #tpu.memory_space<vmem>>, vector<8x8x128xf32>
    tpu.vector_store %arg5[%c0_38, %c72, %c0_39], %49 {strides = array<i32>} : memref<8x128x128xf32, #tpu.memory_space<vmem>>, vector<8x8x128xf32>,
    %cst_40 = arith.constant 0.000000e+00 : f32
    %51 = vector.broadcast %cst_40 : f32 to vector<8x24x128xf32>
    %52 = vector.extract_strided_slice %24 {offsets = [0, 8, 0], sizes = [8, 24, 128], strides = [1, 1, 1]} : vector<8x32x128xf32> to vector<8x24x128xf32>
    %53 = arith.maximumf %51, %52 : vector<8x24x128xf32>
    %c0_41 = arith.constant 0 : index
    %c80 = arith.constant 80 : index
    %c0_42 = arith.constant 0 : index
    %54 = vector.load %arg5[%c0_41, %c80, %c0_42] : memref<8x128x128xf32, #tpu.memory_space<vmem>>, vector<8x24x128xf32>
    tpu.vector_store %arg5[%c0_41, %c80, %c0_42], %53 {strides = array<i32>} : memref<8x128x128xf32, #tpu.memory_space<vmem>>, vector<8x24x128xf32>,
    %cst_43 = arith.constant 0.000000e+00 : f32
    %55 = vector.broadcast %cst_43 : f32 to vector<8x24x128xf32>
    %c0_44 = arith.constant 0 : index
    %c104 = arith.constant 104 : index
    %c0_45 = arith.constant 0 : index
    %56 = vector.load %arg5[%c0_44, %c104, %c0_45] : memref<8x128x128xf32, #tpu.memory_space<vmem>>, vector<8x24x128xf32>
    tpu.vector_store %arg5[%c0_44, %c104, %c0_45], %55 {strides = array<i32>} : memref<8x128x128xf32, #tpu.memory_space<vmem>>, vector<8x24x128xf32>,
    return
  }
  func.func @transform_0(%arg0: i32) -> (i32, i32, i32) {
    %c0_i32 = arith.constant 0 : i32
    %c0_i32_0 = arith.constant 0 : i32
    %c0_i32_1 = arith.constant 0 : i32
    return %arg0, %c0_i32, %c0_i32_0 : i32, i32, i32
  }
  func.func @transform_1(%arg0: i32) -> (i32, i32, i32) {
    %c0_i32 = arith.constant 0 : i32
    %c0_i32_0 = arith.constant 0 : i32
    %c0_i32_1 = arith.constant 0 : i32
    return %arg0, %c0_i32, %c0_i32_0 : i32, i32, i32
  }
  func.func @transform_2(%arg0: i32) -> (i32, i32, i32) {
    %c0_i32 = arith.constant 0 : i32
    %c0_i32_0 = arith.constant 0 : i32
    %c0_i32_1 = arith.constant 0 : i32
    return %arg0, %c0_i32, %c0_i32_0 : i32, i32, i32
  }
  func.func @transform_3(%arg0: i32) -> (i32, i32, i32) {
    %c0_i32 = arith.constant 0 : i32
    %c0_i32_0 = arith.constant 0 : i32
    %c0_i32_1 = arith.constant 0 : i32
    return %arg0, %c0_i32, %c0_i32_0 : i32, i32, i32
  }
  func.func @transform_4(%arg0: i32) -> (i32, i32, i32) {
    %c0_i32 = arith.constant 0 : i32
    %c0_i32_0 = arith.constant 0 : i32
    %c0_i32_1 = arith.constant 0 : i32
    return %arg0, %c0_i32, %c0_i32_0 : i32, i32, i32
  }
}

</mosaic_0001>

<llo_original>
// kernel: tpu_custom_call.1
$region0: #{tpu_custom_call.1}
  #allocation0 [shape = 'u32[]', space=smem, size = 0x4, offset = 0x4, fixed_abs, tag = 'smem constant byte address 0x4 - core index']
  #allocation1 [shape = 'u32[144,128]{1,0:T(1,128)}', space=vmem, size = 0x12000, scoped, tag = 'internal scratch']
  %s0 = inlined_call_operand.hbm [shape: f32[8,40,40], index: 0, kind: input, shape index: {}]
  %s1 = inlined_call_operand.hbm [shape: f32[8,40,40], index: 1, kind: input, shape index: {}]
  %s2 = inlined_call_operand.hbm [shape: f32[8,32,40], index: 2, kind: input, shape index: {}]
  %s3 = inlined_call_operand.hbm [shape: f32[8,32,48], index: 3, kind: input, shape index: {}]
  %s4 = inlined_call_operand.hbm [shape: f32[8,128,128], index: 4, kind: output, shape index: {}]
  %s5 = sld [smem:[#allocation0]]
  $region42: #{tpu_custom_call.1} parent=0
    _
  %s7 = ssub.s32 1, %s5
  %s8 = scalar_select 0, %s7, %s5
  $region1: #{tpu_custom_call.1} parent=0
    #allocation2 [shape = 'u8[163840]{0}', space=vmem, size = 0x28000, scoped, tag = 'input window, operand 0, single buffered']
    #allocation3 [shape = 's32[1]{0}', space=sflag, size = 0x4, scoped, tag = 'scoped memory for tpu_custom_call.1']
    #allocation4 [shape = 's32[1]{0}', space=sflag, size = 0x4, scoped, tag = 'scoped memory for tpu_custom_call.1']
    #allocation5 [shape = 'u8[163840]{0}', space=vmem, size = 0x28000, scoped, tag = 'input window, operand 1, single buffered']
    #allocation6 [shape = 's32[1]{0}', space=sflag, size = 0x4, scoped, tag = 'scoped memory for tpu_custom_call.1']
    #allocation7 [shape = 'u8[131072]{0}', space=vmem, size = 0x20000, scoped, tag = 'input window, operand 2, single buffered']
    #allocation8 [shape = 'u8[131072]{0}', space=vmem, size = 0x20000, scoped, tag = 'input window, operand 3, single buffered']
    #allocation9 [shape = 's32[1]{0}', space=sflag, size = 0x4, scoped, tag = 'scoped memory for tpu_custom_call.1']
    #allocation10 [shape = 'u8[524288]{0}', space=vmem, size = 0x80000, scoped, tag = 'output window, operand 0, single buffered']
    %9 = vsyncpa [#allocation3], 0
    %10 = vsyncpa [#allocation6], 0
    %11 = vsyncpa [#allocation9], 0
    %12 = vsyncpa [#allocation4], 0
    // Predicated region
    $region2: #{tpu_custom_call.1} parent=1 // pred_check
      _
    $region3: #{tpu_custom_call.1} parent=1 // pred_check_branch
      %14 = sbr.rel (0) target = $region5
    $region4: #{tpu_custom_call.1} parent=1 // pred_region
      %s16 = ssub.s32 5120, 5120
      %17 = vsyncadd [#allocation3], %s16
      %s18 = sshll.u32 [#allocation2], 4
      %s19 = int_to_ptr.vmem [resolvable:$true] %s18
      %24 = dma.hbm_to_vmem [thread:$0]  %s0, 5120, %s19, [#allocation3], 128, 128, 8
    $region5: #{tpu_custom_call.1} parent=1 // pred_fallthru
      _
    // Predicated region
    $region6: #{tpu_custom_call.1} parent=1 // pred_check
      _
    $region7: #{tpu_custom_call.1} parent=1 // pred_check_branch
      %26 = sbr.rel (0) target = $region9
    $region8: #{tpu_custom_call.1} parent=1 // pred_region
      %s28 = ssub.s32 5120, 5120
      %29 = vsyncadd [#allocation6], %s28
      %s30 = sshll.u32 [#allocation5], 4
      %s31 = int_to_ptr.vmem [resolvable:$true] %s30
      %36 = dma.hbm_to_vmem [thread:$0]  %s1, 5120, %s31, [#allocation6], 128, 128, 8
    $region9: #{tpu_custom_call.1} parent=1 // pred_fallthru
      _
    // Predicated region
    $region10: #{tpu_custom_call.1} parent=1 // pred_check
      _
    $region11: #{tpu_custom_call.1} parent=1 // pred_check_branch
      %38 = sbr.rel (0) target = $region13
    $region12: #{tpu_custom_call.1} parent=1 // pred_region
      %s40 = ssub.s32 4096, 4096
      %41 = vsyncadd [#allocation6], %s40
      %s42 = sshll.u32 [#allocation7], 4
      %s43 = int_to_ptr.vmem [resolvable:$true] %s42
      %48 = dma.hbm_to_vmem [thread:$0]  %s2, 4096, %s43, [#allocation6], 128, 128, 8
    $region13: #{tpu_custom_call.1} parent=1 // pred_fallthru
      _
    // Predicated region
    $region14: #{tpu_custom_call.1} parent=1 // pred_check
      _
    $region15: #{tpu_custom_call.1} parent=1 // pred_check_branch
      %50 = sbr.rel (0) target = $region17
    $region16: #{tpu_custom_call.1} parent=1 // pred_region
      %s52 = ssub.s32 4096, 4096
      %53 = vsyncadd [#allocation9], %s52
      %s54 = sshll.u32 [#allocation8], 4
      %s55 = int_to_ptr.vmem [resolvable:$true] %s54
      %60 = dma.hbm_to_vmem [thread:$0]  %s3, 4096, %s55, [#allocation9], 128, 128, 8
    $region17: #{tpu_custom_call.1} parent=1 // pred_fallthru
      _
    // Predicated region
    $region18: #{tpu_custom_call.1} parent=1 // pred_check
      _
    $region19: #{tpu_custom_call.1} parent=1 // pred_check_branch
      %62 = sbr.rel (0) target = $region21
    $region20: #{tpu_custom_call.1} parent=1 // pred_region
      %63 = dma.done [#allocation3], 5120
    $region21: #{tpu_custom_call.1} parent=1 // pred_fallthru
      _
    // Predicated region
    $region22: #{tpu_custom_call.1} parent=1 // pred_check
      _
    $region23: #{tpu_custom_call.1} parent=1 // pred_check_branch
      %65 = sbr.rel (0) target = $region25
    $region24: #{tpu_custom_call.1} parent=1 // pred_region
      %66 = dma.done [#allocation6], 5120
    $region25: #{tpu_custom_call.1} parent=1 // pred_fallthru
      _
    // Predicated region
    $region26: #{tpu_custom_call.1} parent=1 // pred_check
      _
    $region27: #{tpu_custom_call.1} parent=1 // pred_check_branch
      %68 = sbr.rel (0) target = $region29
    $region28: #{tpu_custom_call.1} parent=1 // pred_region
      %69 = dma.done [#allocation6], 4096
    $region29: #{tpu_custom_call.1} parent=1 // pred_fallthru
      _
    // Predicated region
    $region30: #{tpu_custom_call.1} parent=1 // pred_check
      _
    $region31: #{tpu_custom_call.1} parent=1 // pred_check_branch
      %71 = sbr.rel (0) target = $region33
    $region32: #{tpu_custom_call.1} parent=1 // pred_region
      %72 = dma.done [#allocation9], 4096
    $region33: #{tpu_custom_call.1} parent=1 // pred_fallthru
      _
    %v73 = vld [vmem:[#allocation2] sm:$0xff]
    %v74 = vld [vmem:[#allocation2 + $0x8] sm:$0xff]
    %v75 = vld [vmem:[#allocation2 + $0x10] sm:$0xff]
    %v76 = vld [vmem:[#allocation2 + $0x18] sm:$0xff]
    %v77 = vld [vmem:[#allocation2 + $0x20] sm:$0xff]
    %v78 = vld [vmem:[#allocation2 + $0x28] sm:$0xff]
    %v79 = vld [vmem:[#allocation2 + $0x30] sm:$0xff]
    %v80 = vld [vmem:[#allocation2 + $0x38] sm:$0xff]
    %v81 = vld [vmem:[#allocation2 + $0x40] sm:$0xff]
    %v82 = vld [vmem:[#allocation2 + $0x48] sm:$0xff]
    %v83 = vld [vmem:[#allocation2 + $0x50] sm:$0xff]
    %v84 = vld [vmem:[#allocation2 + $0x58] sm:$0xff]
    %v85 = vld [vmem:[#allocation2 + $0x60] sm:$0xff]
    %v86 = vld [vmem:[#allocation2 + $0x68] sm:$0xff]
    %v87 = vld [vmem:[#allocation2 + $0x70] sm:$0xff]
    %v88 = vld [vmem:[#allocation2 + $0x78] sm:$0xff]
    %v89 = vld [vmem:[#allocation2 + $0x80] sm:$0xff]
    %v90 = vld [vmem:[#allocation2 + $0x88] sm:$0xff]
    %v91 = vld [vmem:[#allocation2 + $0x90] sm:$0xff]
    %v92 = vld [vmem:[#allocation2 + $0x98] sm:$0xff]
    %v93 = vld [vmem:[#allocation2 + $0xa0] sm:$0xff]
    %v94 = vld [vmem:[#allocation2 + $0xa8] sm:$0xff]
    %v95 = vld [vmem:[#allocation2 + $0xb0] sm:$0xff]
    %v96 = vld [vmem:[#allocation2 + $0xb8] sm:$0xff]
    %v97 = vld [vmem:[#allocation2 + $0xc0] sm:$0xff]
    %v98 = vld [vmem:[#allocation2 + $0xc8] sm:$0xff]
    %v99 = vld [vmem:[#allocation2 + $0xd0] sm:$0xff]
    %v100 = vld [vmem:[#allocation2 + $0xd8] sm:$0xff]
    %v101 = vld [vmem:[#allocation2 + $0xe0] sm:$0xff]
    %v102 = vld [vmem:[#allocation2 + $0xe8] sm:$0xff]
    %v103 = vld [vmem:[#allocation2 + $0xf0] sm:$0xff]
    %v104 = vld [vmem:[#allocation2 + $0xf8] sm:$0xff]
    %v105 = vld [vmem:[#allocation2 + $0x100] sm:$0xff]
    %v106 = vld [vmem:[#allocation2 + $0x108] sm:$0xff]
    %v107 = vld [vmem:[#allocation2 + $0x110] sm:$0xff]
    %v108 = vld [vmem:[#allocation2 + $0x118] sm:$0xff]
    %v109 = vld [vmem:[#allocation2 + $0x120] sm:$0xff]
    %v110 = vld [vmem:[#allocation2 + $0x128] sm:$0xff]
    %v111 = vld [vmem:[#allocation2 + $0x130] sm:$0xff]
    %v112 = vld [vmem:[#allocation2 + $0x138] sm:$0xff]
    %153 = vrot.lane.b32.xlu0 %v73, 18
    %v154 = vpop.permute.xlu0 %153
    %155 = vrot.lane.b32.xlu0 %v74, 18
    %v156 = vpop.permute.xlu0 %155
    %157 = vrot.lane.b32.xlu0 %v75, 18
    %v158 = vpop.permute.xlu0 %157
    %159 = vrot.lane.b32.xlu0 %v76, 18
    %v160 = vpop.permute.xlu0 %159
    %161 = vrot.lane.b32.xlu0 %v77, 18
    %v162 = vpop.permute.xlu0 %161
    %163 = vrot.lane.b32.xlu0 %v78, 18
    %v164 = vpop.permute.xlu0 %163
    %165 = vrot.lane.b32.xlu0 %v79, 18
    %v166 = vpop.permute.xlu0 %165
    %167 = vrot.lane.b32.xlu0 %v80, 18
    %v168 = vpop.permute.xlu0 %167
    %169 = vrot.lane.b32.xlu0 %v81, 18
    %v170 = vpop.permute.xlu0 %169
    %171 = vrot.lane.b32.xlu0 %v82, 18
    %v172 = vpop.permute.xlu0 %171
    %173 = vrot.lane.b32.xlu0 %v83, 18
    %v174 = vpop.permute.xlu0 %173
    %175 = vrot.lane.b32.xlu0 %v84, 18
    %v176 = vpop.permute.xlu0 %175
    %177 = vrot.lane.b32.xlu0 %v85, 18
    %v178 = vpop.permute.xlu0 %177
    %179 = vrot.lane.b32.xlu0 %v86, 18
    %v180 = vpop.permute.xlu0 %179
    %181 = vrot.lane.b32.xlu0 %v87, 18
    %v182 = vpop.permute.xlu0 %181
    %183 = vrot.lane.b32.xlu0 %v88, 18
    %v184 = vpop.permute.xlu0 %183
    %185 = vrot.lane.b32.xlu0 %v89, 18
    %v186 = vpop.permute.xlu0 %185
    %187 = vrot.lane.b32.xlu0 %v90, 18
    %v188 = vpop.permute.xlu0 %187
    %189 = vrot.lane.b32.xlu0 %v91, 18
    %v190 = vpop.permute.xlu0 %189
    %191 = vrot.lane.b32.xlu0 %v92, 18
    %v192 = vpop.permute.xlu0 %191
    %193 = vrot.lane.b32.xlu0 %v93, 18
    %v194 = vpop.permute.xlu0 %193
    %195 = vrot.lane.b32.xlu0 %v94, 18
    %v196 = vpop.permute.xlu0 %195
    %197 = vrot.lane.b32.xlu0 %v95, 18
    %v198 = vpop.permute.xlu0 %197
    %199 = vrot.lane.b32.xlu0 %v96, 18
    %v200 = vpop.permute.xlu0 %199
    %201 = vrot.lane.b32.xlu0 %v97, 18
    %v202 = vpop.permute.xlu0 %201
    %203 = vrot.lane.b32.xlu0 %v98, 18
    %v204 = vpop.permute.xlu0 %203
    %205 = vrot.lane.b32.xlu0 %v99, 18
    %v206 = vpop.permute.xlu0 %205
    %207 = vrot.lane.b32.xlu0 %v100, 18
    %v208 = vpop.permute.xlu0 %207
    %209 = vrot.lane.b32.xlu0 %v101, 18
    %v210 = vpop.permute.xlu0 %209
    %211 = vrot.lane.b32.xlu0 %v102, 18
    %v212 = vpop.permute.xlu0 %211
    %213 = vrot.lane.b32.xlu0 %v103, 18
    %v214 = vpop.permute.xlu0 %213
    %215 = vrot.lane.b32.xlu0 %v104, 18
    %v216 = vpop.permute.xlu0 %215
    %217 = vrot.lane.b32.xlu0 %v105, 18
    %v218 = vpop.permute.xlu0 %217
    %219 = vrot.lane.b32.xlu0 %v106, 18
    %v220 = vpop.permute.xlu0 %219
    %221 = vrot.lane.b32.xlu0 %v107, 18
    %v222 = vpop.permute.xlu0 %221
    %223 = vrot.lane.b32.xlu0 %v108, 18
    %v224 = vpop.permute.xlu0 %223
    %225 = vrot.lane.b32.xlu0 %v109, 18
    %v226 = vpop.permute.xlu0 %225
    %227 = vrot.lane.b32.xlu0 %v110, 18
    %v228 = vpop.permute.xlu0 %227
    %229 = vrot.lane.b32.xlu0 %v111, 18
    %v230 = vpop.permute.xlu0 %229
    %231 = vrot.lane.b32.xlu0 %v112, 18
    %v232 = vpop.permute.xlu0 %231
    %vm273 = vcmask 146432
    %v274 = vsel %vm273, 0.0, %v154
    %v275 = vsel %vm273, 0.0, %v156
    %v276 = vsel %vm273, 0.0, %v158
    %v277 = vsel %vm273, 0.0, %v160
    %v278 = vsel %vm273, 0.0, %v162
    %v279 = vsel %vm273, 0.0, %v164
    %v280 = vsel %vm273, 0.0, %v166
    %v281 = vsel %vm273, 0.0, %v168
    %v282 = vsel %vm273, 0.0, %v170
    %v283 = vsel %vm273, 0.0, %v172
    %v284 = vsel %vm273, 0.0, %v174
    %v285 = vsel %vm273, 0.0, %v176
    %v286 = vsel %vm273, 0.0, %v178
    %v287 = vsel %vm273, 0.0, %v180
    %v288 = vsel %vm273, 0.0, %v182
    %v289 = vsel %vm273, 0.0, %v184
    %v290 = vsel %vm273, 0.0, %v186
    %v291 = vsel %vm273, 0.0, %v188
    %v292 = vsel %vm273, 0.0, %v190
    %v293 = vsel %vm273, 0.0, %v192
    %v294 = vsel %vm273, 0.0, %v194
    %v295 = vsel %vm273, 0.0, %v196
    %v296 = vsel %vm273, 0.0, %v198
    %v297 = vsel %vm273, 0.0, %v200
    %v298 = vsel %vm273, 0.0, %v202
    %v299 = vsel %vm273, 0.0, %v204
    %v300 = vsel %vm273, 0.0, %v206
    %v301 = vsel %vm273, 0.0, %v208
    %v302 = vsel %vm273, 0.0, %v210
    %v303 = vsel %vm273, 0.0, %v212
    %v304 = vsel %vm273, 0.0, %v214
    %v305 = vsel %vm273, 0.0, %v216
    %v306 = vsel %vm273, 0.0, %v218
    %v307 = vsel %vm273, 0.0, %v220
    %v308 = vsel %vm273, 0.0, %v222
    %v309 = vsel %vm273, 0.0, %v224
    %v310 = vsel %vm273, 0.0, %v226
    %v311 = vsel %vm273, 0.0, %v228
    %v312 = vsel %vm273, 0.0, %v230
    %v313 = vsel %vm273, 0.0, %v232
    %vm314 = vcmask 474112
    %v315 = vsel %vm314, %v274, 0.0
    %v316 = vsel %vm314, %v275, 0.0
    %v317 = vsel %vm314, %v276, 0.0
    %v318 = vsel %vm314, %v277, 0.0
    %v319 = vsel %vm314, %v278, 0.0
    %v320 = vsel %vm314, %v279, 0.0
    %v321 = vsel %vm314, %v280, 0.0
    %v322 = vsel %vm314, %v281, 0.0
    %v323 = vsel %vm314, %v282, 0.0
    %v324 = vsel %vm314, %v283, 0.0
    %v325 = vsel %vm314, %v284, 0.0
    %v326 = vsel %vm314, %v285, 0.0
    %v327 = vsel %vm314, %v286, 0.0
    %v328 = vsel %vm314, %v287, 0.0
    %v329 = vsel %vm314, %v288, 0.0
    %v330 = vsel %vm314, %v289, 0.0
    %v331 = vsel %vm314, %v290, 0.0
    %v332 = vsel %vm314, %v291, 0.0
    %v333 = vsel %vm314, %v292, 0.0
    %v334 = vsel %vm314, %v293, 0.0
    %v335 = vsel %vm314, %v294, 0.0
    %v336 = vsel %vm314, %v295, 0.0
    %v337 = vsel %vm314, %v296, 0.0
    %v338 = vsel %vm314, %v297, 0.0
    %v339 = vsel %vm314, %v298, 0.0
    %v340 = vsel %vm314, %v299, 0.0
    %v341 = vsel %vm314, %v300, 0.0
    %v342 = vsel %vm314, %v301, 0.0
    %v343 = vsel %vm314, %v302, 0.0
    %v344 = vsel %vm314, %v303, 0.0
    %v345 = vsel %vm314, %v304, 0.0
    %v346 = vsel %vm314, %v305, 0.0
    %v347 = vsel %vm314, %v306, 0.0
    %v348 = vsel %vm314, %v307, 0.0
    %v349 = vsel %vm314, %v308, 0.0
    %v350 = vsel %vm314, %v309, 0.0
    %v351 = vsel %vm314, %v310, 0.0
    %v352 = vsel %vm314, %v311, 0.0
    %v353 = vsel %vm314, %v312, 0.0
    %v354 = vsel %vm314, %v313, 0.0
    %vm395 = vcmask 1042432
    %v396 = vrot.slane %v315, 5
    %v397 = vrot.slane %v316, 5
    %v398 = vsel %vm395, %v396, %v397
    %v399 = vrot.slane %v317, 5
    %v400 = vsel %vm395, %v397, %v399
    %v401 = vrot.slane %v318, 5
    %v402 = vsel %vm395, %v399, %v401
    %v403 = vrot.slane %v319, 5
    %v404 = vsel %vm395, %v401, %v403
    %v405 = vrot.slane %v320, 5
    %v406 = vrot.slane %v321, 5
    %v407 = vsel %vm395, %v405, %v406
    %v408 = vrot.slane %v322, 5
    %v409 = vsel %vm395, %v406, %v408
    %v410 = vrot.slane %v323, 5
    %v411 = vsel %vm395, %v408, %v410
    %v412 = vrot.slane %v324, 5
    %v413 = vsel %vm395, %v410, %v412
    %v414 = vrot.slane %v325, 5
    %v415 = vrot.slane %v326, 5
    %v416 = vsel %vm395, %v414, %v415
    %v417 = vrot.slane %v327, 5
    %v418 = vsel %vm395, %v415, %v417
    %v419 = vrot.slane %v328, 5
    %v420 = vsel %vm395, %v417, %v419
    %v421 = vrot.slane %v329, 5
    %v422 = vsel %vm395, %v419, %v421
    %v423 = vrot.slane %v330, 5
    %v424 = vrot.slane %v331, 5
    %v425 = vsel %vm395, %v423, %v424
    %v426 = vrot.slane %v332, 5
    %v427 = vsel %vm395, %v424, %v426
    %v428 = vrot.slane %v333, 5
    %v429 = vsel %vm395, %v426, %v428
    %v430 = vrot.slane %v334, 5
    %v431 = vsel %vm395, %v428, %v430
    %v432 = vrot.slane %v335, 5
    %v433 = vrot.slane %v336, 5
    %v434 = vsel %vm395, %v432, %v433
    %v435 = vrot.slane %v337, 5
    %v436 = vsel %vm395, %v433, %v435
    %v437 = vrot.slane %v338, 5
    %v438 = vsel %vm395, %v435, %v437
    %v439 = vrot.slane %v339, 5
    %v440 = vsel %vm395, %v437, %v439
    %v441 = vrot.slane %v340, 5
    %v442 = vrot.slane %v341, 5
    %v443 = vsel %vm395, %v441, %v442
    %v444 = vrot.slane %v342, 5
    %v445 = vsel %vm395, %v442, %v444
    %v446 = vrot.slane %v343, 5
    %v447 = vsel %vm395, %v444, %v446
    %v448 = vrot.slane %v344, 5
    %v449 = vsel %vm395, %v446, %v448
    %v450 = vrot.slane %v345, 5
    %v451 = vrot.slane %v346, 5
    %v452 = vsel %vm395, %v450, %v451
    %v453 = vrot.slane %v347, 5
    %v454 = vsel %vm395, %v451, %v453
    %v455 = vrot.slane %v348, 5
    %v456 = vsel %vm395, %v453, %v455
    %v457 = vrot.slane %v349, 5
    %v458 = vsel %vm395, %v455, %v457
    %v459 = vrot.slane %v350, 5
    %v460 = vrot.slane %v351, 5
    %v461 = vsel %vm395, %v459, %v460
    %v462 = vrot.slane %v352, 5
    %v463 = vsel %vm395, %v460, %v462
    %v464 = vrot.slane %v353, 5
    %v465 = vsel %vm395, %v462, %v464
    %v466 = vrot.slane %v354, 5
    %v467 = vsel %vm395, %v464, %v466
    %v516 = vsel %vm395, 0.0, %v396
    %v517 = vsel %vm395, 0.0, %v405
    %v518 = vsel %vm395, 0.0, %v414
    %v519 = vsel %vm395, 0.0, %v423
    %v520 = vsel %vm395, 0.0, %v432
    %v521 = vsel %vm395, 0.0, %v441
    %v522 = vsel %vm395, 0.0, %v450
    %v523 = vsel %vm395, 0.0, %v459
    %v524 = vsel %vm395, %v403, 0.0
    %v525 = vsel %vm395, %v412, 0.0
    %v526 = vsel %vm395, %v421, 0.0
    %v527 = vsel %vm395, %v430, 0.0
    %v528 = vsel %vm395, %v439, 0.0
    %v529 = vsel %vm395, %v448, 0.0
    %v530 = vsel %vm395, %v457, 0.0
    %v531 = vsel %vm395, %v466, 0.0
    %v532 = vld [vmem:[#allocation5] sm:$0xff]
    %v533 = vld [vmem:[#allocation5 + $0x8] sm:$0xff]
    %v534 = vld [vmem:[#allocation5 + $0x10] sm:$0xff]
    %v535 = vld [vmem:[#allocation5 + $0x18] sm:$0xff]
    %v536 = vld [vmem:[#allocation5 + $0x20] sm:$0xff]
    %v537 = vld [vmem:[#allocation5 + $0x28] sm:$0xff]
    %v538 = vld [vmem:[#allocation5 + $0x30] sm:$0xff]
    %v539 = vld [vmem:[#allocation5 + $0x38] sm:$0xff]
    %v540 = vld [vmem:[#allocation5 + $0x40] sm:$0xff]
    %v541 = vld [vmem:[#allocation5 + $0x48] sm:$0xff]
    %v542 = vld [vmem:[#allocation5 + $0x50] sm:$0xff]
    %v543 = vld [vmem:[#allocation5 + $0x58] sm:$0xff]
    %v544 = vld [vmem:[#allocation5 + $0x60] sm:$0xff]
    %v545 = vld [vmem:[#allocation5 + $0x68] sm:$0xff]
    %v546 = vld [vmem:[#allocation5 + $0x70] sm:$0xff]
    %v547 = vld [vmem:[#allocation5 + $0x78] sm:$0xff]
    %v548 = vld [vmem:[#allocation5 + $0x80] sm:$0xff]
    %v549 = vld [vmem:[#allocation5 + $0x88] sm:$0xff]
    %v550 = vld [vmem:[#allocation5 + $0x90] sm:$0xff]
    %v551 = vld [vmem:[#allocation5 + $0x98] sm:$0xff]
    %v552 = vld [vmem:[#allocation5 + $0xa0] sm:$0xff]
    %v553 = vld [vmem:[#allocation5 + $0xa8] sm:$0xff]
    %v554 = vld [vmem:[#allocation5 + $0xb0] sm:$0xff]
    %v555 = vld [vmem:[#allocation5 + $0xb8] sm:$0xff]
    %v556 = vld [vmem:[#allocation5 + $0xc0] sm:$0xff]
    %v557 = vld [vmem:[#allocation5 + $0xc8] sm:$0xff]
    %v558 = vld [vmem:[#allocation5 + $0xd0] sm:$0xff]
    %v559 = vld [vmem:[#allocation5 + $0xd8] sm:$0xff]
    %v560 = vld [vmem:[#allocation5 + $0xe0] sm:$0xff]
    %v561 = vld [vmem:[#allocation5 + $0xe8] sm:$0xff]
    %v562 = vld [vmem:[#allocation5 + $0xf0] sm:$0xff]
    %v563 = vld [vmem:[#allocation5 + $0xf8] sm:$0xff]
    %v564 = vld [vmem:[#allocation5 + $0x100] sm:$0xff]
    %v565 = vld [vmem:[#allocation5 + $0x108] sm:$0xff]
    %v566 = vld [vmem:[#allocation5 + $0x110] sm:$0xff]
    %v567 = vld [vmem:[#allocation5 + $0x118] sm:$0xff]
    %v568 = vld [vmem:[#allocation5 + $0x120] sm:$0xff]
    %v569 = vld [vmem:[#allocation5 + $0x128] sm:$0xff]
    %v570 = vld [vmem:[#allocation5 + $0x130] sm:$0xff]
    %v571 = vld [vmem:[#allocation5 + $0x138] sm:$0xff]
    %612 = vrot.lane.b32.xlu0 %v532, 65
    %v613 = vpop.permute.xlu0 %612
    %614 = vrot.lane.b32.xlu0 %v533, 65
    %v615 = vpop.permute.xlu0 %614
    %616 = vrot.lane.b32.xlu0 %v534, 65
    %v617 = vpop.permute.xlu0 %616
    %618 = vrot.lane.b32.xlu0 %v535, 65
    %v619 = vpop.permute.xlu0 %618
    %620 = vrot.lane.b32.xlu0 %v536, 65
    %v621 = vpop.permute.xlu0 %620
    %622 = vrot.lane.b32.xlu0 %v537, 65
    %v623 = vpop.permute.xlu0 %622
    %624 = vrot.lane.b32.xlu0 %v538, 65
    %v625 = vpop.permute.xlu0 %624
    %626 = vrot.lane.b32.xlu0 %v539, 65
    %v627 = vpop.permute.xlu0 %626
    %628 = vrot.lane.b32.xlu0 %v540, 65
    %v629 = vpop.permute.xlu0 %628
    %630 = vrot.lane.b32.xlu0 %v541, 65
    %v631 = vpop.permute.xlu0 %630
    %632 = vrot.lane.b32.xlu0 %v542, 65
    %v633 = vpop.permute.xlu0 %632
    %634 = vrot.lane.b32.xlu0 %v543, 65
    %v635 = vpop.permute.xlu0 %634
    %636 = vrot.lane.b32.xlu0 %v544, 65
    %v637 = vpop.permute.xlu0 %636
    %638 = vrot.lane.b32.xlu0 %v545, 65
    %v639 = vpop.permute.xlu0 %638
    %640 = vrot.lane.b32.xlu0 %v546, 65
    %v641 = vpop.permute.xlu0 %640
    %642 = vrot.lane.b32.xlu0 %v547, 65
    %v643 = vpop.permute.xlu0 %642
    %644 = vrot.lane.b32.xlu0 %v548, 65
    %v645 = vpop.permute.xlu0 %644
    %646 = vrot.lane.b32.xlu0 %v549, 65
    %v647 = vpop.permute.xlu0 %646
    %648 = vrot.lane.b32.xlu0 %v550, 65
    %v649 = vpop.permute.xlu0 %648
    %650 = vrot.lane.b32.xlu0 %v551, 65
    %v651 = vpop.permute.xlu0 %650
    %652 = vrot.lane.b32.xlu0 %v552, 65
    %v653 = vpop.permute.xlu0 %652
    %654 = vrot.lane.b32.xlu0 %v553, 65
    %v655 = vpop.permute.xlu0 %654
    %656 = vrot.lane.b32.xlu0 %v554, 65
    %v657 = vpop.permute.xlu0 %656
    %658 = vrot.lane.b32.xlu0 %v555, 65
    %v659 = vpop.permute.xlu0 %658
    %660 = vrot.lane.b32.xlu0 %v556, 65
    %v661 = vpop.permute.xlu0 %660
    %662 = vrot.lane.b32.xlu0 %v557, 65
    %v663 = vpop.permute.xlu0 %662
    %664 = vrot.lane.b32.xlu0 %v558, 65
    %v665 = vpop.permute.xlu0 %664
    %666 = vrot.lane.b32.xlu0 %v559, 65
    %v667 = vpop.permute.xlu0 %666
    %668 = vrot.lane.b32.xlu0 %v560, 65
    %v669 = vpop.permute.xlu0 %668
    %670 = vrot.lane.b32.xlu0 %v561, 65
    %v671 = vpop.permute.xlu0 %670
    %672 = vrot.lane.b32.xlu0 %v562, 65
    %v673 = vpop.permute.xlu0 %672
    %674 = vrot.lane.b32.xlu0 %v563, 65
    %v675 = vpop.permute.xlu0 %674
    %676 = vrot.lane.b32.xlu0 %v564, 65
    %v677 = vpop.permute.xlu0 %676
    %678 = vrot.lane.b32.xlu0 %v565, 65
    %v679 = vpop.permute.xlu0 %678
    %680 = vrot.lane.b32.xlu0 %v566, 65
    %v681 = vpop.permute.xlu0 %680
    %682 = vrot.lane.b32.xlu0 %v567, 65
    %v683 = vpop.permute.xlu0 %682
    %684 = vrot.lane.b32.xlu0 %v568, 65
    %v685 = vpop.permute.xlu0 %684
    %686 = vrot.lane.b32.xlu0 %v569, 65
    %v687 = vpop.permute.xlu0 %686
    %688 = vrot.lane.b32.xlu0 %v570, 65
    %v689 = vpop.permute.xlu0 %688
    %690 = vrot.lane.b32.xlu0 %v571, 65
    %v691 = vpop.permute.xlu0 %690
    %vm732 = vcmask 531456
    %v733 = vsel %vm732, 0.0, %v613
    %v734 = vsel %vm732, 0.0, %v615
    %v735 = vsel %vm732, 0.0, %v617
    %v736 = vsel %vm732, 0.0, %v619
    %v737 = vsel %vm732, 0.0, %v621
    %v738 = vsel %vm732, 0.0, %v623
    %v739 = vsel %vm732, 0.0, %v625
    %v740 = vsel %vm732, 0.0, %v627
    %v741 = vsel %vm732, 0.0, %v629
    %v742 = vsel %vm732, 0.0, %v631
    %v743 = vsel %vm732, 0.0, %v633
    %v744 = vsel %vm732, 0.0, %v635
    %v745 = vsel %vm732, 0.0, %v637
    %v746 = vsel %vm732, 0.0, %v639
    %v747 = vsel %vm732, 0.0, %v641
    %v748 = vsel %vm732, 0.0, %v643
    %v749 = vsel %vm732, 0.0, %v645
    %v750 = vsel %vm732, 0.0, %v647
    %v751 = vsel %vm732, 0.0, %v649
    %v752 = vsel %vm732, 0.0, %v651
    %v753 = vsel %vm732, 0.0, %v653
    %v754 = vsel %vm732, 0.0, %v655
    %v755 = vsel %vm732, 0.0, %v657
    %v756 = vsel %vm732, 0.0, %v659
    %v757 = vsel %vm732, 0.0, %v661
    %v758 = vsel %vm732, 0.0, %v663
    %v759 = vsel %vm732, 0.0, %v665
    %v760 = vsel %vm732, 0.0, %v667
    %v761 = vsel %vm732, 0.0, %v669
    %v762 = vsel %vm732, 0.0, %v671
    %v763 = vsel %vm732, 0.0, %v673
    %v764 = vsel %vm732, 0.0, %v675
    %v765 = vsel %vm732, 0.0, %v677
    %v766 = vsel %vm732, 0.0, %v679
    %v767 = vsel %vm732, 0.0, %v681
    %v768 = vsel %vm732, 0.0, %v683
    %v769 = vsel %vm732, 0.0, %v685
    %v770 = vsel %vm732, 0.0, %v687
    %v771 = vsel %vm732, 0.0, %v689
    %v772 = vsel %vm732, 0.0, %v691
    %vm773 = vcmask 859136
    %v774 = vsel %vm773, %v733, 0.0
    %v775 = vsel %vm773, %v734, 0.0
    %v776 = vsel %vm773, %v735, 0.0
    %v777 = vsel %vm773, %v736, 0.0
    %v778 = vsel %vm773, %v737, 0.0
    %v779 = vsel %vm773, %v738, 0.0
    %v780 = vsel %vm773, %v739, 0.0
    %v781 = vsel %vm773, %v740, 0.0
    %v782 = vsel %vm773, %v741, 0.0
    %v783 = vsel %vm773, %v742, 0.0
    %v784 = vsel %vm773, %v743, 0.0
    %v785 = vsel %vm773, %v744, 0.0
    %v786 = vsel %vm773, %v745, 0.0
    %v787 = vsel %vm773, %v746, 0.0
    %v788 = vsel %vm773, %v747, 0.0
    %v789 = vsel %vm773, %v748, 0.0
    %v790 = vsel %vm773, %v749, 0.0
    %v791 = vsel %vm773, %v750, 0.0
    %v792 = vsel %vm773, %v751, 0.0
    %v793 = vsel %vm773, %v752, 0.0
    %v794 = vsel %vm773, %v753, 0.0
    %v795 = vsel %vm773, %v754, 0.0
    %v796 = vsel %vm773, %v755, 0.0
    %v797 = vsel %vm773, %v756, 0.0
    %v798 = vsel %vm773, %v757, 0.0
    %v799 = vsel %vm773, %v758, 0.0
    %v800 = vsel %vm773, %v759, 0.0
    %v801 = vsel %vm773, %v760, 0.0
    %v802 = vsel %vm773, %v761, 0.0
    %v803 = vsel %vm773, %v762, 0.0
    %v804 = vsel %vm773, %v763, 0.0
    %v805 = vsel %vm773, %v764, 0.0
    %v806 = vsel %vm773, %v765, 0.0
    %v807 = vsel %vm773, %v766, 0.0
    %v808 = vsel %vm773, %v767, 0.0
    %v809 = vsel %vm773, %v768, 0.0
    %v810 = vsel %vm773, %v769, 0.0
    %v811 = vsel %vm773, %v770, 0.0
    %v812 = vsel %vm773, %v771, 0.0
    %v813 = vsel %vm773, %v772, 0.0
    %vm854 = vcmask 1041408
    %v855 = vrot.slane %v774, 6
    %v856 = vrot.slane %v775, 6
    %v857 = vsel %vm854, %v855, %v856
    %v858 = vrot.slane %v776, 6
    %v859 = vsel %vm854, %v856, %v858
    %v860 = vrot.slane %v777, 6
    %v861 = vsel %vm854, %v858, %v860
    %v862 = vrot.slane %v778, 6
    %v863 = vsel %vm854, %v860, %v862
    %v864 = vrot.slane %v779, 6
    %v865 = vrot.slane %v780, 6
    %v866 = vsel %vm854, %v864, %v865
    %v867 = vrot.slane %v781, 6
    %v868 = vsel %vm854, %v865, %v867
    %v869 = vrot.slane %v782, 6
    %v870 = vsel %vm854, %v867, %v869
    %v871 = vrot.slane %v783, 6
    %v872 = vsel %vm854, %v869, %v871
    %v873 = vrot.slane %v784, 6
    %v874 = vrot.slane %v785, 6
    %v875 = vsel %vm854, %v873, %v874
    %v876 = vrot.slane %v786, 6
    %v877 = vsel %vm854, %v874, %v876
    %v878 = vrot.slane %v787, 6
    %v879 = vsel %vm854, %v876, %v878
    %v880 = vrot.slane %v788, 6
    %v881 = vsel %vm854, %v878, %v880
    %v882 = vrot.slane %v789, 6
    %v883 = vrot.slane %v790, 6
    %v884 = vsel %vm854, %v882, %v883
    %v885 = vrot.slane %v791, 6
    %v886 = vsel %vm854, %v883, %v885
    %v887 = vrot.slane %v792, 6
    %v888 = vsel %vm854, %v885, %v887
    %v889 = vrot.slane %v793, 6
    %v890 = vsel %vm854, %v887, %v889
    %v891 = vrot.slane %v794, 6
    %v892 = vrot.slane %v795, 6
    %v893 = vsel %vm854, %v891, %v892
    %v894 = vrot.slane %v796, 6
    %v895 = vsel %vm854, %v892, %v894
    %v896 = vrot.slane %v797, 6
    %v897 = vsel %vm854, %v894, %v896
    %v898 = vrot.slane %v798, 6
    %v899 = vsel %vm854, %v896, %v898
    %v900 = vrot.slane %v799, 6
    %v901 = vrot.slane %v800, 6
    %v902 = vsel %vm854, %v900, %v901
    %v903 = vrot.slane %v801, 6
    %v904 = vsel %vm854, %v901, %v903
    %v905 = vrot.slane %v802, 6
    %v906 = vsel %vm854, %v903, %v905
    %v907 = vrot.slane %v803, 6
    %v908 = vsel %vm854, %v905, %v907
    %v909 = vrot.slane %v804, 6
    %v910 = vrot.slane %v805, 6
    %v911 = vsel %vm854, %v909, %v910
    %v912 = vrot.slane %v806, 6
    %v913 = vsel %vm854, %v910, %v912
    %v914 = vrot.slane %v807, 6
    %v915 = vsel %vm854, %v912, %v914
    %v916 = vrot.slane %v808, 6
    %v917 = vsel %vm854, %v914, %v916
    %v918 = vrot.slane %v809, 6
    %v919 = vrot.slane %v810, 6
    %v920 = vsel %vm854, %v918, %v919
    %v921 = vrot.slane %v811, 6
    %v922 = vsel %vm854, %v919, %v921
    %v923 = vrot.slane %v812, 6
    %v924 = vsel %vm854, %v921, %v923
    %v925 = vrot.slane %v813, 6
    %v926 = vsel %vm854, %v923, %v925
    %v975 = vsel %vm854, 0.0, %v855
    %v976 = vsel %vm854, 0.0, %v864
    %v977 = vsel %vm854, 0.0, %v873
    %v978 = vsel %vm854, 0.0, %v882
    %v979 = vsel %vm854, 0.0, %v891
    %v980 = vsel %vm854, 0.0, %v900
    %v981 = vsel %vm854, 0.0, %v909
    %v982 = vsel %vm854, 0.0, %v918
    %v983 = vsel %vm854, %v862, 0.0
    %v984 = vsel %vm854, %v871, 0.0
    %v985 = vsel %vm854, %v880, 0.0
    %v986 = vsel %vm854, %v889, 0.0
    %v987 = vsel %vm854, %v898, 0.0
    %v988 = vsel %vm854, %v907, 0.0
    %v989 = vsel %vm854, %v916, 0.0
    %v990 = vsel %vm854, %v925, 0.0
    %v991 = vld [vmem:[#allocation7] sm:$0xff]
    %v992 = vld [vmem:[#allocation7 + $0x8] sm:$0xff]
    %v993 = vld [vmem:[#allocation7 + $0x10] sm:$0xff]
    %v994 = vld [vmem:[#allocation7 + $0x18] sm:$0xff]
    %v995 = vld [vmem:[#allocation7 + $0x20] sm:$0xff]
    %v996 = vld [vmem:[#allocation7 + $0x28] sm:$0xff]
    %v997 = vld [vmem:[#allocation7 + $0x30] sm:$0xff]
    %v998 = vld [vmem:[#allocation7 + $0x38] sm:$0xff]
    %v999 = vld [vmem:[#allocation7 + $0x40] sm:$0xff]
    %v1000 = vld [vmem:[#allocation7 + $0x48] sm:$0xff]
    %v1001 = vld [vmem:[#allocation7 + $0x50] sm:$0xff]
    %v1002 = vld [vmem:[#allocation7 + $0x58] sm:$0xff]
    %v1003 = vld [vmem:[#allocation7 + $0x60] sm:$0xff]
    %v1004 = vld [vmem:[#allocation7 + $0x68] sm:$0xff]
    %v1005 = vld [vmem:[#allocation7 + $0x70] sm:$0xff]
    %v1006 = vld [vmem:[#allocation7 + $0x78] sm:$0xff]
    %v1007 = vld [vmem:[#allocation7 + $0x80] sm:$0xff]
    %v1008 = vld [vmem:[#allocation7 + $0x88] sm:$0xff]
    %v1009 = vld [vmem:[#allocation7 + $0x90] sm:$0xff]
    %v1010 = vld [vmem:[#allocation7 + $0x98] sm:$0xff]
    %v1011 = vld [vmem:[#allocation7 + $0xa0] sm:$0xff]
    %v1012 = vld [vmem:[#allocation7 + $0xa8] sm:$0xff]
    %v1013 = vld [vmem:[#allocation7 + $0xb0] sm:$0xff]
    %v1014 = vld [vmem:[#allocation7 + $0xb8] sm:$0xff]
    %v1015 = vld [vmem:[#allocation7 + $0xc0] sm:$0xff]
    %v1016 = vld [vmem:[#allocation7 + $0xc8] sm:$0xff]
    %v1017 = vld [vmem:[#allocation7 + $0xd0] sm:$0xff]
    %v1018 = vld [vmem:[#allocation7 + $0xd8] sm:$0xff]
    %v1019 = vld [vmem:[#allocation7 + $0xe0] sm:$0xff]
    %v1020 = vld [vmem:[#allocation7 + $0xe8] sm:$0xff]
    %v1021 = vld [vmem:[#allocation7 + $0xf0] sm:$0xff]
    %v1022 = vld [vmem:[#allocation7 + $0xf8] sm:$0xff]
    %1055 = vrot.lane.b32.xlu0 %v991, 43
    %v1056 = vpop.permute.xlu0 %1055
    %1057 = vrot.lane.b32.xlu0 %v992, 43
    %v1058 = vpop.permute.xlu0 %1057
    %1059 = vrot.lane.b32.xlu0 %v993, 43
    %v1060 = vpop.permute.xlu0 %1059
    %1061 = vrot.lane.b32.xlu0 %v994, 43
    %v1062 = vpop.permute.xlu0 %1061
    %1063 = vrot.lane.b32.xlu0 %v995, 43
    %v1064 = vpop.permute.xlu0 %1063
    %1065 = vrot.lane.b32.xlu0 %v996, 43
    %v1066 = vpop.permute.xlu0 %1065
    %1067 = vrot.lane.b32.xlu0 %v997, 43
    %v1068 = vpop.permute.xlu0 %1067
    %1069 = vrot.lane.b32.xlu0 %v998, 43
    %v1070 = vpop.permute.xlu0 %1069
    %1071 = vrot.lane.b32.xlu0 %v999, 43
    %v1072 = vpop.permute.xlu0 %1071
    %1073 = vrot.lane.b32.xlu0 %v1000, 43
    %v1074 = vpop.permute.xlu0 %1073
    %1075 = vrot.lane.b32.xlu0 %v1001, 43
    %v1076 = vpop.permute.xlu0 %1075
    %1077 = vrot.lane.b32.xlu0 %v1002, 43
    %v1078 = vpop.permute.xlu0 %1077
    %1079 = vrot.lane.b32.xlu0 %v1003, 43
    %v1080 = vpop.permute.xlu0 %1079
    %1081 = vrot.lane.b32.xlu0 %v1004, 43
    %v1082 = vpop.permute.xlu0 %1081
    %1083 = vrot.lane.b32.xlu0 %v1005, 43
    %v1084 = vpop.permute.xlu0 %1083
    %1085 = vrot.lane.b32.xlu0 %v1006, 43
    %v1086 = vpop.permute.xlu0 %1085
    %1087 = vrot.lane.b32.xlu0 %v1007, 43
    %v1088 = vpop.permute.xlu0 %1087
    %1089 = vrot.lane.b32.xlu0 %v1008, 43
    %v1090 = vpop.permute.xlu0 %1089
    %1091 = vrot.lane.b32.xlu0 %v1009, 43
    %v1092 = vpop.permute.xlu0 %1091
    %1093 = vrot.lane.b32.xlu0 %v1010, 43
    %v1094 = vpop.permute.xlu0 %1093
    %1095 = vrot.lane.b32.xlu0 %v1011, 43
    %v1096 = vpop.permute.xlu0 %1095
    %1097 = vrot.lane.b32.xlu0 %v1012, 43
    %v1098 = vpop.permute.xlu0 %1097
    %1099 = vrot.lane.b32.xlu0 %v1013, 43
    %v1100 = vpop.permute.xlu0 %1099
    %1101 = vrot.lane.b32.xlu0 %v1014, 43
    %v1102 = vpop.permute.xlu0 %1101
    %1103 = vrot.lane.b32.xlu0 %v1015, 43
    %v1104 = vpop.permute.xlu0 %1103
    %1105 = vrot.lane.b32.xlu0 %v1016, 43
    %v1106 = vpop.permute.xlu0 %1105
    %1107 = vrot.lane.b32.xlu0 %v1017, 43
    %v1108 = vpop.permute.xlu0 %1107
    %1109 = vrot.lane.b32.xlu0 %v1018, 43
    %v1110 = vpop.permute.xlu0 %1109
    %1111 = vrot.lane.b32.xlu0 %v1019, 43
    %v1112 = vpop.permute.xlu0 %1111
    %1113 = vrot.lane.b32.xlu0 %v1020, 43
    %v1114 = vpop.permute.xlu0 %1113
    %1115 = vrot.lane.b32.xlu0 %v1021, 43
    %v1116 = vpop.permute.xlu0 %1115
    %1117 = vrot.lane.b32.xlu0 %v1022, 43
    %v1118 = vpop.permute.xlu0 %1117
    %vm1151 = vcmask 351232
    %v1152 = vsel %vm1151, 0.0, %v1056
    %v1153 = vsel %vm1151, 0.0, %v1058
    %v1154 = vsel %vm1151, 0.0, %v1060
    %v1155 = vsel %vm1151, 0.0, %v1062
    %v1156 = vsel %vm1151, 0.0, %v1064
    %v1157 = vsel %vm1151, 0.0, %v1066
    %v1158 = vsel %vm1151, 0.0, %v1068
    %v1159 = vsel %vm1151, 0.0, %v1070
    %v1160 = vsel %vm1151, 0.0, %v1072
    %v1161 = vsel %vm1151, 0.0, %v1074
    %v1162 = vsel %vm1151, 0.0, %v1076
    %v1163 = vsel %vm1151, 0.0, %v1078
    %v1164 = vsel %vm1151, 0.0, %v1080
    %v1165 = vsel %vm1151, 0.0, %v1082
    %v1166 = vsel %vm1151, 0.0, %v1084
    %v1167 = vsel %vm1151, 0.0, %v1086
    %v1168 = vsel %vm1151, 0.0, %v1088
    %v1169 = vsel %vm1151, 0.0, %v1090
    %v1170 = vsel %vm1151, 0.0, %v1092
    %v1171 = vsel %vm1151, 0.0, %v1094
    %v1172 = vsel %vm1151, 0.0, %v1096
    %v1173 = vsel %vm1151, 0.0, %v1098
    %v1174 = vsel %vm1151, 0.0, %v1100
    %v1175 = vsel %vm1151, 0.0, %v1102
    %v1176 = vsel %vm1151, 0.0, %v1104
    %v1177 = vsel %vm1151, 0.0, %v1106
    %v1178 = vsel %vm1151, 0.0, %v1108
    %v1179 = vsel %vm1151, 0.0, %v1110
    %v1180 = vsel %vm1151, 0.0, %v1112
    %v1181 = vsel %vm1151, 0.0, %v1114
    %v1182 = vsel %vm1151, 0.0, %v1116
    %v1183 = vsel %vm1151, 0.0, %v1118
    %vm1184 = vcmask 678912
    %v1185 = vsel %vm1184, %v1152, 0.0
    %v1186 = vsel %vm1184, %v1153, 0.0
    %v1187 = vsel %vm1184, %v1154, 0.0
    %v1188 = vsel %vm1184, %v1155, 0.0
    %v1189 = vsel %vm1184, %v1156, 0.0
    %v1190 = vsel %vm1184, %v1157, 0.0
    %v1191 = vsel %vm1184, %v1158, 0.0
    %v1192 = vsel %vm1184, %v1159, 0.0
    %v1193 = vsel %vm1184, %v1160, 0.0
    %v1194 = vsel %vm1184, %v1161, 0.0
    %v1195 = vsel %vm1184, %v1162, 0.0
    %v1196 = vsel %vm1184, %v1163, 0.0
    %v1197 = vsel %vm1184, %v1164, 0.0
    %v1198 = vsel %vm1184, %v1165, 0.0
    %v1199 = vsel %vm1184, %v1166, 0.0
    %v1200 = vsel %vm1184, %v1167, 0.0
    %v1201 = vsel %vm1184, %v1168, 0.0
    %v1202 = vsel %vm1184, %v1169, 0.0
    %v1203 = vsel %vm1184, %v1170, 0.0
    %v1204 = vsel %vm1184, %v1171, 0.0
    %v1205 = vsel %vm1184, %v1172, 0.0
    %v1206 = vsel %vm1184, %v1173, 0.0
    %v1207 = vsel %vm1184, %v1174, 0.0
    %v1208 = vsel %vm1184, %v1175, 0.0
    %v1209 = vsel %vm1184, %v1176, 0.0
    %v1210 = vsel %vm1184, %v1177, 0.0
    %v1211 = vsel %vm1184, %v1178, 0.0
    %v1212 = vsel %vm1184, %v1179, 0.0
    %v1213 = vsel %vm1184, %v1180, 0.0
    %v1214 = vsel %vm1184, %v1181, 0.0
    %v1215 = vsel %vm1184, %v1182, 0.0
    %v1216 = vsel %vm1184, %v1183, 0.0
    %vm1249 = vcmask 1046528
    %v1250 = vrot.slane %v1185, 1
    %v1251 = vrot.slane %v1186, 1
    %v1252 = vsel %vm1249, %v1250, %v1251
    %v1253 = vrot.slane %v1187, 1
    %v1254 = vsel %vm1249, %v1251, %v1253
    %v1255 = vrot.slane %v1188, 1
    %v1256 = vsel %vm1249, %v1253, %v1255
    %v1257 = vrot.slane %v1189, 1
    %v1258 = vrot.slane %v1190, 1
    %v1259 = vsel %vm1249, %v1257, %v1258
    %v1260 = vrot.slane %v1191, 1
    %v1261 = vsel %vm1249, %v1258, %v1260
    %v1262 = vrot.slane %v1192, 1
    %v1263 = vsel %vm1249, %v1260, %v1262
    %v1264 = vrot.slane %v1193, 1
    %v1265 = vrot.slane %v1194, 1
    %v1266 = vsel %vm1249, %v1264, %v1265
    %v1267 = vrot.slane %v1195, 1
    %v1268 = vsel %vm1249, %v1265, %v1267
    %v1269 = vrot.slane %v1196, 1
    %v1270 = vsel %vm1249, %v1267, %v1269
    %v1271 = vrot.slane %v1197, 1
    %v1272 = vrot.slane %v1198, 1
    %v1273 = vsel %vm1249, %v1271, %v1272
    %v1274 = vrot.slane %v1199, 1
    %v1275 = vsel %vm1249, %v1272, %v1274
    %v1276 = vrot.slane %v1200, 1
    %v1277 = vsel %vm1249, %v1274, %v1276
    %v1278 = vrot.slane %v1201, 1
    %v1279 = vrot.slane %v1202, 1
    %v1280 = vsel %vm1249, %v1278, %v1279
    %v1281 = vrot.slane %v1203, 1
    %v1282 = vsel %vm1249, %v1279, %v1281
    %v1283 = vrot.slane %v1204, 1
    %v1284 = vsel %vm1249, %v1281, %v1283
    %v1285 = vrot.slane %v1205, 1
    %v1286 = vrot.slane %v1206, 1
    %v1287 = vsel %vm1249, %v1285, %v1286
    %v1288 = vrot.slane %v1207, 1
    %v1289 = vsel %vm1249, %v1286, %v1288
    %v1290 = vrot.slane %v1208, 1
    %v1291 = vsel %vm1249, %v1288, %v1290
    %v1292 = vrot.slane %v1209, 1
    %v1293 = vrot.slane %v1210, 1
    %v1294 = vsel %vm1249, %v1292, %v1293
    %v1295 = vrot.slane %v1211, 1
    %v1296 = vsel %vm1249, %v1293, %v1295
    %v1297 = vrot.slane %v1212, 1
    %v1298 = vsel %vm1249, %v1295, %v1297
    %v1299 = vrot.slane %v1213, 1
    %v1300 = vrot.slane %v1214, 1
    %v1301 = vsel %vm1249, %v1299, %v1300
    %v1302 = vrot.slane %v1215, 1
    %v1303 = vsel %vm1249, %v1300, %v1302
    %v1304 = vrot.slane %v1216, 1
    %v1305 = vsel %vm1249, %v1302, %v1304
    %v1346 = vsel %vm1249, 0.0, %v1250
    %v1347 = vsel %vm1249, 0.0, %v1257
    %v1348 = vsel %vm1249, 0.0, %v1264
    %v1349 = vsel %vm1249, 0.0, %v1271
    %v1350 = vsel %vm1249, 0.0, %v1278
    %v1351 = vsel %vm1249, 0.0, %v1285
    %v1352 = vsel %vm1249, 0.0, %v1292
    %v1353 = vsel %vm1249, 0.0, %v1299
    %v1354 = vsel %vm1249, %v1255, 0.0
    %v1355 = vsel %vm1249, %v1262, 0.0
    %v1356 = vsel %vm1249, %v1269, 0.0
    %v1357 = vsel %vm1249, %v1276, 0.0
    %v1358 = vsel %vm1249, %v1283, 0.0
    %v1359 = vsel %vm1249, %v1290, 0.0
    %v1360 = vsel %vm1249, %v1297, 0.0
    %v1361 = vsel %vm1249, %v1304, 0.0
    %v1362 = vld [vmem:[#allocation8] sm:$0xff]
    %v1363 = vld [vmem:[#allocation8 + $0x8] sm:$0xff]
    %v1364 = vld [vmem:[#allocation8 + $0x10] sm:$0xff]
    %v1365 = vld [vmem:[#allocation8 + $0x18] sm:$0xff]
    %v1366 = vld [vmem:[#allocation8 + $0x20] sm:$0xff]
    %v1367 = vld [vmem:[#allocation8 + $0x28] sm:$0xff]
    %v1368 = vld [vmem:[#allocation8 + $0x30] sm:$0xff]
    %v1369 = vld [vmem:[#allocation8 + $0x38] sm:$0xff]
    %v1370 = vld [vmem:[#allocation8 + $0x40] sm:$0xff]
    %v1371 = vld [vmem:[#allocation8 + $0x48] sm:$0xff]
    %v1372 = vld [vmem:[#allocation8 + $0x50] sm:$0xff]
    %v1373 = vld [vmem:[#allocation8 + $0x58] sm:$0xff]
    %v1374 = vld [vmem:[#allocation8 + $0x60] sm:$0xff]
    %v1375 = vld [vmem:[#allocation8 + $0x68] sm:$0xff]
    %v1376 = vld [vmem:[#allocation8 + $0x70] sm:$0xff]
    %v1377 = vld [vmem:[#allocation8 + $0x78] sm:$0xff]
    %v1378 = vld [vmem:[#allocation8 + $0x80] sm:$0xff]
    %v1379 = vld [vmem:[#allocation8 + $0x88] sm:$0xff]
    %v1380 = vld [vmem:[#allocation8 + $0x90] sm:$0xff]
    %v1381 = vld [vmem:[#allocation8 + $0x98] sm:$0xff]
    %v1382 = vld [vmem:[#allocation8 + $0xa0] sm:$0xff]
    %v1383 = vld [vmem:[#allocation8 + $0xa8] sm:$0xff]
    %v1384 = vld [vmem:[#allocation8 + $0xb0] sm:$0xff]
    %v1385 = vld [vmem:[#allocation8 + $0xb8] sm:$0xff]
    %v1386 = vld [vmem:[#allocation8 + $0xc0] sm:$0xff]
    %v1387 = vld [vmem:[#allocation8 + $0xc8] sm:$0xff]
    %v1388 = vld [vmem:[#allocation8 + $0xd0] sm:$0xff]
    %v1389 = vld [vmem:[#allocation8 + $0xd8] sm:$0xff]
    %v1390 = vld [vmem:[#allocation8 + $0xe0] sm:$0xff]
    %v1391 = vld [vmem:[#allocation8 + $0xe8] sm:$0xff]
    %v1392 = vld [vmem:[#allocation8 + $0xf0] sm:$0xff]
    %v1393 = vld [vmem:[#allocation8 + $0xf8] sm:$0xff]
    %1426 = vrot.lane.b32.xlu0 %v1362, 40
    %v1427 = vpop.permute.xlu0 %1426
    %1428 = vrot.lane.b32.xlu0 %v1363, 40
    %v1429 = vpop.permute.xlu0 %1428
    %1430 = vrot.lane.b32.xlu0 %v1364, 40
    %v1431 = vpop.permute.xlu0 %1430
    %1432 = vrot.lane.b32.xlu0 %v1365, 40
    %v1433 = vpop.permute.xlu0 %1432
    %1434 = vrot.lane.b32.xlu0 %v1366, 40
    %v1435 = vpop.permute.xlu0 %1434
    %1436 = vrot.lane.b32.xlu0 %v1367, 40
    %v1437 = vpop.permute.xlu0 %1436
    %1438 = vrot.lane.b32.xlu0 %v1368, 40
    %v1439 = vpop.permute.xlu0 %1438
    %1440 = vrot.lane.b32.xlu0 %v1369, 40
    %v1441 = vpop.permute.xlu0 %1440
    %1442 = vrot.lane.b32.xlu0 %v1370, 40
    %v1443 = vpop.permute.xlu0 %1442
    %1444 = vrot.lane.b32.xlu0 %v1371, 40
    %v1445 = vpop.permute.xlu0 %1444
    %1446 = vrot.lane.b32.xlu0 %v1372, 40
    %v1447 = vpop.permute.xlu0 %1446
    %1448 = vrot.lane.b32.xlu0 %v1373, 40
    %v1449 = vpop.permute.xlu0 %1448
    %1450 = vrot.lane.b32.xlu0 %v1374, 40
    %v1451 = vpop.permute.xlu0 %1450
    %1452 = vrot.lane.b32.xlu0 %v1375, 40
    %v1453 = vpop.permute.xlu0 %1452
    %1454 = vrot.lane.b32.xlu0 %v1376, 40
    %v1455 = vpop.permute.xlu0 %1454
    %1456 = vrot.lane.b32.xlu0 %v1377, 40
    %v1457 = vpop.permute.xlu0 %1456
    %1458 = vrot.lane.b32.xlu0 %v1378, 40
    %v1459 = vpop.permute.xlu0 %1458
    %1460 = vrot.lane.b32.xlu0 %v1379, 40
    %v1461 = vpop.permute.xlu0 %1460
    %1462 = vrot.lane.b32.xlu0 %v1380, 40
    %v1463 = vpop.permute.xlu0 %1462
    %1464 = vrot.lane.b32.xlu0 %v1381, 40
    %v1465 = vpop.permute.xlu0 %1464
    %1466 = vrot.lane.b32.xlu0 %v1382, 40
    %v1467 = vpop.permute.xlu0 %1466
    %1468 = vrot.lane.b32.xlu0 %v1383, 40
    %v1469 = vpop.permute.xlu0 %1468
    %1470 = vrot.lane.b32.xlu0 %v1384, 40
    %v1471 = vpop.permute.xlu0 %1470
    %1472 = vrot.lane.b32.xlu0 %v1385, 40
    %v1473 = vpop.permute.xlu0 %1472
    %1474 = vrot.lane.b32.xlu0 %v1386, 40
    %v1475 = vpop.permute.xlu0 %1474
    %1476 = vrot.lane.b32.xlu0 %v1387, 40
    %v1477 = vpop.permute.xlu0 %1476
    %1478 = vrot.lane.b32.xlu0 %v1388, 40
    %v1479 = vpop.permute.xlu0 %1478
    %1480 = vrot.lane.b32.xlu0 %v1389, 40
    %v1481 = vpop.permute.xlu0 %1480
    %1482 = vrot.lane.b32.xlu0 %v1390, 40
    %v1483 = vpop.permute.xlu0 %1482
    %1484 = vrot.lane.b32.xlu0 %v1391, 40
    %v1485 = vpop.permute.xlu0 %1484
    %1486 = vrot.lane.b32.xlu0 %v1392, 40
    %v1487 = vpop.permute.xlu0 %1486
    %1488 = vrot.lane.b32.xlu0 %v1393, 40
    %v1489 = vpop.permute.xlu0 %1488
    %vm1522 = vcmask 326656
    %v1523 = vsel %vm1522, 0.0, %v1427
    %v1524 = vsel %vm1522, 0.0, %v1429
    %v1525 = vsel %vm1522, 0.0, %v1431
    %v1526 = vsel %vm1522, 0.0, %v1433
    %v1527 = vsel %vm1522, 0.0, %v1435
    %v1528 = vsel %vm1522, 0.0, %v1437
    %v1529 = vsel %vm1522, 0.0, %v1439
    %v1530 = vsel %vm1522, 0.0, %v1441
    %v1531 = vsel %vm1522, 0.0, %v1443
    %v1532 = vsel %vm1522, 0.0, %v1445
    %v1533 = vsel %vm1522, 0.0, %v1447
    %v1534 = vsel %vm1522, 0.0, %v1449
    %v1535 = vsel %vm1522, 0.0, %v1451
    %v1536 = vsel %vm1522, 0.0, %v1453
    %v1537 = vsel %vm1522, 0.0, %v1455
    %v1538 = vsel %vm1522, 0.0, %v1457
    %v1539 = vsel %vm1522, 0.0, %v1459
    %v1540 = vsel %vm1522, 0.0, %v1461
    %v1541 = vsel %vm1522, 0.0, %v1463
    %v1542 = vsel %vm1522, 0.0, %v1465
    %v1543 = vsel %vm1522, 0.0, %v1467
    %v1544 = vsel %vm1522, 0.0, %v1469
    %v1545 = vsel %vm1522, 0.0, %v1471
    %v1546 = vsel %vm1522, 0.0, %v1473
    %v1547 = vsel %vm1522, 0.0, %v1475
    %v1548 = vsel %vm1522, 0.0, %v1477
    %v1549 = vsel %vm1522, 0.0, %v1479
    %v1550 = vsel %vm1522, 0.0, %v1481
    %v1551 = vsel %vm1522, 0.0, %v1483
    %v1552 = vsel %vm1522, 0.0, %v1485
    %v1553 = vsel %vm1522, 0.0, %v1487
    %v1554 = vsel %vm1522, 0.0, %v1489
    %vm1555 = vcmask 719872
    %v1556 = vsel %vm1555, %v1523, 0.0
    %v1557 = vsel %vm1555, %v1524, 0.0
    %v1558 = vsel %vm1555, %v1525, 0.0
    %v1559 = vsel %vm1555, %v1526, 0.0
    %v1560 = vsel %vm1555, %v1527, 0.0
    %v1561 = vsel %vm1555, %v1528, 0.0
    %v1562 = vsel %vm1555, %v1529, 0.0
    %v1563 = vsel %vm1555, %v1530, 0.0
    %v1564 = vsel %vm1555, %v1531, 0.0
    %v1565 = vsel %vm1555, %v1532, 0.0
    %v1566 = vsel %vm1555, %v1533, 0.0
    %v1567 = vsel %vm1555, %v1534, 0.0
    %v1568 = vsel %vm1555, %v1535, 0.0
    %v1569 = vsel %vm1555, %v1536, 0.0
    %v1570 = vsel %vm1555, %v1537, 0.0
    %v1571 = vsel %vm1555, %v1538, 0.0
    %v1572 = vsel %vm1555, %v1539, 0.0
    %v1573 = vsel %vm1555, %v1540, 0.0
    %v1574 = vsel %vm1555, %v1541, 0.0
    %v1575 = vsel %vm1555, %v1542, 0.0
    %v1576 = vsel %vm1555, %v1543, 0.0
    %v1577 = vsel %vm1555, %v1544, 0.0
    %v1578 = vsel %vm1555, %v1545, 0.0
    %v1579 = vsel %vm1555, %v1546, 0.0
    %v1580 = vsel %vm1555, %v1547, 0.0
    %v1581 = vsel %vm1555, %v1548, 0.0
    %v1582 = vsel %vm1555, %v1549, 0.0
    %v1583 = vsel %vm1555, %v1550, 0.0
    %v1584 = vsel %vm1555, %v1551, 0.0
    %v1585 = vsel %vm1555, %v1552, 0.0
    %v1586 = vsel %vm1555, %v1553, 0.0
    %v1587 = vsel %vm1555, %v1554, 0.0
    %1588 = vst [vmem:[#allocation10] sm:$0xff] 0.0
    %1589 = vst [vmem:[#allocation10 + $0x8] sm:$0xff] 0.0
    %1590 = vst [vmem:[#allocation10 + $0x80] sm:$0xff] 0.0
    %1591 = vst [vmem:[#allocation10 + $0x88] sm:$0xff] 0.0
    %1592 = vst [vmem:[#allocation10 + $0x100] sm:$0xff] 0.0
    %1593 = vst [vmem:[#allocation10 + $0x108] sm:$0xff] 0.0
    %1594 = vst [vmem:[#allocation10 + $0x180] sm:$0xff] 0.0
    %1595 = vst [vmem:[#allocation10 + $0x188] sm:$0xff] 0.0
    %1596 = vst [vmem:[#allocation10 + $0x200] sm:$0xff] 0.0
    %1597 = vst [vmem:[#allocation10 + $0x208] sm:$0xff] 0.0
    %1598 = vst [vmem:[#allocation10 + $0x280] sm:$0xff] 0.0
    %1599 = vst [vmem:[#allocation10 + $0x288] sm:$0xff] 0.0
    %1600 = vst [vmem:[#allocation10 + $0x300] sm:$0xff] 0.0
    %1601 = vst [vmem:[#allocation10 + $0x308] sm:$0xff] 0.0
    %1602 = vst [vmem:[#allocation10 + $0x380] sm:$0xff] 0.0
    %1603 = vst [vmem:[#allocation10 + $0x388] sm:$0xff] 0.0
    %v1604 = vmax.f32 %v516, 0.0
    %v1605 = vmax.f32 %v398, 0.0
    %v1606 = vmax.f32 %v400, 0.0
    %v1607 = vmax.f32 %v517, 0.0
    %v1608 = vmax.f32 %v407, 0.0
    %v1609 = vmax.f32 %v409, 0.0
    %v1610 = vmax.f32 %v518, 0.0
    %v1611 = vmax.f32 %v416, 0.0
    %v1612 = vmax.f32 %v418, 0.0
    %v1613 = vmax.f32 %v519, 0.0
    %v1614 = vmax.f32 %v425, 0.0
    %v1615 = vmax.f32 %v427, 0.0
    %v1616 = vmax.f32 %v520, 0.0
    %v1617 = vmax.f32 %v434, 0.0
    %v1618 = vmax.f32 %v436, 0.0
    %v1619 = vmax.f32 %v521, 0.0
    %v1620 = vmax.f32 %v443, 0.0
    %v1621 = vmax.f32 %v445, 0.0
    %v1622 = vmax.f32 %v522, 0.0
    %v1623 = vmax.f32 %v452, 0.0
    %v1624 = vmax.f32 %v454, 0.0
    %v1625 = vmax.f32 %v523, 0.0
    %v1626 = vmax.f32 %v461, 0.0
    %v1627 = vmax.f32 %v463, 0.0
    %v1628 = vmax.f32 %v1604, %v975
    %v1629 = vmax.f32 %v1605, %v857
    %v1630 = vmax.f32 %v1606, %v859
    %v1631 = vmax.f32 %v1607, %v976
    %v1632 = vmax.f32 %v1608, %v866
    %v1633 = vmax.f32 %v1609, %v868
    %v1634 = vmax.f32 %v1610, %v977
    %v1635 = vmax.f32 %v1611, %v875
    %v1636 = vmax.f32 %v1612, %v877
    %v1637 = vmax.f32 %v1613, %v978
    %v1638 = vmax.f32 %v1614, %v884
    %v1639 = vmax.f32 %v1615, %v886
    %v1640 = vmax.f32 %v1616, %v979
    %v1641 = vmax.f32 %v1617, %v893
    %v1642 = vmax.f32 %v1618, %v895
    %v1643 = vmax.f32 %v1619, %v980
    %v1644 = vmax.f32 %v1620, %v902
    %v1645 = vmax.f32 %v1621, %v904
    %v1646 = vmax.f32 %v1622, %v981
    %v1647 = vmax.f32 %v1623, %v911
    %v1648 = vmax.f32 %v1624, %v913
    %v1649 = vmax.f32 %v1625, %v982
    %v1650 = vmax.f32 %v1626, %v920
    %v1651 = vmax.f32 %v1627, %v922
    %1652 = vst [vmem:[#allocation10 + $0x10] sm:$0xff] %v1628
    %1653 = vst [vmem:[#allocation10 + $0x18] sm:$0xff] %v1629
    %1654 = vst [vmem:[#allocation10 + $0x20] sm:$0xff] %v1630
    %1655 = vst [vmem:[#allocation10 + $0x90] sm:$0xff] %v1631
    %1656 = vst [vmem:[#allocation10 + $0x98] sm:$0xff] %v1632
    %1657 = vst [vmem:[#allocation10 + $0xa0] sm:$0xff] %v1633
    %1658 = vst [vmem:[#allocation10 + $0x110] sm:$0xff] %v1634
    %1659 = vst [vmem:[#allocation10 + $0x118] sm:$0xff] %v1635
    %1660 = vst [vmem:[#allocation10 + $0x120] sm:$0xff] %v1636
    %1661 = vst [vmem:[#allocation10 + $0x190] sm:$0xff] %v1637
    %1662 = vst [vmem:[#allocation10 + $0x198] sm:$0xff] %v1638
    %1663 = vst [vmem:[#allocation10 + $0x1a0] sm:$0xff] %v1639
    %1664 = vst [vmem:[#allocation10 + $0x210] sm:$0xff] %v1640
    %1665 = vst [vmem:[#allocation10 + $0x218] sm:$0xff] %v1641
    %1666 = vst [vmem:[#allocation10 + $0x220] sm:$0xff] %v1642
    %1667 = vst [vmem:[#allocation10 + $0x290] sm:$0xff] %v1643
    %1668 = vst [vmem:[#allocation10 + $0x298] sm:$0xff] %v1644
    %1669 = vst [vmem:[#allocation10 + $0x2a0] sm:$0xff] %v1645
    %1670 = vst [vmem:[#allocation10 + $0x310] sm:$0xff] %v1646
    %1671 = vst [vmem:[#allocation10 + $0x318] sm:$0xff] %v1647
    %1672 = vst [vmem:[#allocation10 + $0x320] sm:$0xff] %v1648
    %1673 = vst [vmem:[#allocation10 + $0x390] sm:$0xff] %v1649
    %1674 = vst [vmem:[#allocation10 + $0x398] sm:$0xff] %v1650
    %1675 = vst [vmem:[#allocation10 + $0x3a0] sm:$0xff] %v1651
    %v1676 = vmax.f32 %v402, 0.0
    %v1677 = vmax.f32 %v404, 0.0
    %v1678 = vmax.f32 %v524, 0.0
    %v1679 = vmax.f32 %v411, 0.0
    %v1680 = vmax.f32 %v413, 0.0
    %v1681 = vmax.f32 %v525, 0.0
    %v1682 = vmax.f32 %v420, 0.0
    %v1683 = vmax.f32 %v422, 0.0
    %v1684 = vmax.f32 %v526, 0.0
    %v1685 = vmax.f32 %v429, 0.0
    %v1686 = vmax.f32 %v431, 0.0
    %v1687 = vmax.f32 %v527, 0.0
    %v1688 = vmax.f32 %v438, 0.0
    %v1689 = vmax.f32 %v440, 0.0
    %v1690 = vmax.f32 %v528, 0.0
    %v1691 = vmax.f32 %v447, 0.0
    %v1692 = vmax.f32 %v449, 0.0
    %v1693 = vmax.f32 %v529, 0.0
    %v1694 = vmax.f32 %v456, 0.0
    %v1695 = vmax.f32 %v458, 0.0
    %v1696 = vmax.f32 %v530, 0.0
    %v1697 = vmax.f32 %v465, 0.0
    %v1698 = vmax.f32 %v467, 0.0
    %v1699 = vmax.f32 %v531, 0.0
    %v1700 = vmax.f32 %v1676, %v861
    %v1701 = vmax.f32 %v1677, %v863
    %v1702 = vmax.f32 %v1678, %v983
    %v1703 = vmax.f32 %v1679, %v870
    %v1704 = vmax.f32 %v1680, %v872
    %v1705 = vmax.f32 %v1681, %v984
    %v1706 = vmax.f32 %v1682, %v879
    %v1707 = vmax.f32 %v1683, %v881
    %v1708 = vmax.f32 %v1684, %v985
    %v1709 = vmax.f32 %v1685, %v888
    %v1710 = vmax.f32 %v1686, %v890
    %v1711 = vmax.f32 %v1687, %v986
    %v1712 = vmax.f32 %v1688, %v897
    %v1713 = vmax.f32 %v1689, %v899
    %v1714 = vmax.f32 %v1690, %v987
    %v1715 = vmax.f32 %v1691, %v906
    %v1716 = vmax.f32 %v1692, %v908
    %v1717 = vmax.f32 %v1693, %v988
    %v1718 = vmax.f32 %v1694, %v915
    %v1719 = vmax.f32 %v1695, %v917
    %v1720 = vmax.f32 %v1696, %v989
    %v1721 = vmax.f32 %v1697, %v924
    %v1722 = vmax.f32 %v1698, %v926
    %v1723 = vmax.f32 %v1699, %v990
    %v1724 = vmax.f32 %v1700, %v1346
    %v1725 = vmax.f32 %v1701, %v1252
    %v1726 = vmax.f32 %v1702, %v1254
    %v1727 = vmax.f32 %v1703, %v1347
    %v1728 = vmax.f32 %v1704, %v1259
    %v1729 = vmax.f32 %v1705, %v1261
    %v1730 = vmax.f32 %v1706, %v1348
    %v1731 = vmax.f32 %v1707, %v1266
    %v1732 = vmax.f32 %v1708, %v1268
    %v1733 = vmax.f32 %v1709, %v1349
    %v1734 = vmax.f32 %v1710, %v1273
    %v1735 = vmax.f32 %v1711, %v1275
    %v1736 = vmax.f32 %v1712, %v1350
    %v1737 = vmax.f32 %v1713, %v1280
    %v1738 = vmax.f32 %v1714, %v1282
    %v1739 = vmax.f32 %v1715, %v1351
    %v1740 = vmax.f32 %v1716, %v1287
    %v1741 = vmax.f32 %v1717, %v1289
    %v1742 = vmax.f32 %v1718, %v1352
    %v1743 = vmax.f32 %v1719, %v1294
    %v1744 = vmax.f32 %v1720, %v1296
    %v1745 = vmax.f32 %v1721, %v1353
    %v1746 = vmax.f32 %v1722, %v1301
    %v1747 = vmax.f32 %v1723, %v1303
    %1748 = vst [vmem:[#allocation10 + $0x28] sm:$0xff] %v1724
    %1749 = vst [vmem:[#allocation10 + $0x30] sm:$0xff] %v1725
    %1750 = vst [vmem:[#allocation10 + $0x38] sm:$0xff] %v1726
    %1751 = vst [vmem:[#allocation10 + $0xa8] sm:$0xff] %v1727
    %1752 = vst [vmem:[#allocation10 + $0xb0] sm:$0xff] %v1728
    %1753 = vst [vmem:[#allocation10 + $0xb8] sm:$0xff] %v1729
    %1754 = vst [vmem:[#allocation10 + $0x128] sm:$0xff] %v1730
    %1755 = vst [vmem:[#allocation10 + $0x130] sm:$0xff] %v1731
    %1756 = vst [vmem:[#allocation10 + $0x138] sm:$0xff] %v1732
    %1757 = vst [vmem:[#allocation10 + $0x1a8] sm:$0xff] %v1733
    %1758 = vst [vmem:[#allocation10 + $0x1b0] sm:$0xff] %v1734
    %1759 = vst [vmem:[#allocation10 + $0x1b8] sm:$0xff] %v1735
    %1760 = vst [vmem:[#allocation10 + $0x228] sm:$0xff] %v1736
    %1761 = vst [vmem:[#allocation10 + $0x230] sm:$0xff] %v1737
    %1762 = vst [vmem:[#allocation10 + $0x238] sm:$0xff] %v1738
    %1763 = vst [vmem:[#allocation10 + $0x2a8] sm:$0xff] %v1739
    %1764 = vst [vmem:[#allocation10 + $0x2b0] sm:$0xff] %v1740
    %1765 = vst [vmem:[#allocation10 + $0x2b8] sm:$0xff] %v1741
    %1766 = vst [vmem:[#allocation10 + $0x328] sm:$0xff] %v1742
    %1767 = vst [vmem:[#allocation10 + $0x330] sm:$0xff] %v1743
    %1768 = vst [vmem:[#allocation10 + $0x338] sm:$0xff] %v1744
    %1769 = vst [vmem:[#allocation10 + $0x3a8] sm:$0xff] %v1745
    %1770 = vst [vmem:[#allocation10 + $0x3b0] sm:$0xff] %v1746
    %1771 = vst [vmem:[#allocation10 + $0x3b8] sm:$0xff] %v1747
    %v1772 = vmax.f32 %v1256, 0.0
    %v1773 = vmax.f32 %v1263, 0.0
    %v1774 = vmax.f32 %v1270, 0.0
    %v1775 = vmax.f32 %v1277, 0.0
    %v1776 = vmax.f32 %v1284, 0.0
    %v1777 = vmax.f32 %v1291, 0.0
    %v1778 = vmax.f32 %v1298, 0.0
    %v1779 = vmax.f32 %v1305, 0.0
    %1780 = vst [vmem:[#allocation10 + $0x40] sm:$0xff] %v1772
    %1781 = vst [vmem:[#allocation10 + $0xc0] sm:$0xff] %v1773
    %1782 = vst [vmem:[#allocation10 + $0x140] sm:$0xff] %v1774
    %1783 = vst [vmem:[#allocation10 + $0x1c0] sm:$0xff] %v1775
    %1784 = vst [vmem:[#allocation10 + $0x240] sm:$0xff] %v1776
    %1785 = vst [vmem:[#allocation10 + $0x2c0] sm:$0xff] %v1777
    %1786 = vst [vmem:[#allocation10 + $0x340] sm:$0xff] %v1778
    %1787 = vst [vmem:[#allocation10 + $0x3c0] sm:$0xff] %v1779
    %v1788 = vmax.f32 %v1354, 0.0
    %v1789 = vmax.f32 %v1355, 0.0
    %v1790 = vmax.f32 %v1356, 0.0
    %v1791 = vmax.f32 %v1357, 0.0
    %v1792 = vmax.f32 %v1358, 0.0
    %v1793 = vmax.f32 %v1359, 0.0
    %v1794 = vmax.f32 %v1360, 0.0
    %v1795 = vmax.f32 %v1361, 0.0
    %v1796 = vmax.f32 %v1788, %v1556
    %v1797 = vmax.f32 %v1789, %v1560
    %v1798 = vmax.f32 %v1790, %v1564
    %v1799 = vmax.f32 %v1791, %v1568
    %v1800 = vmax.f32 %v1792, %v1572
    %v1801 = vmax.f32 %v1793, %v1576
    %v1802 = vmax.f32 %v1794, %v1580
    %v1803 = vmax.f32 %v1795, %v1584
    %1804 = vst [vmem:[#allocation10 + $0x48] sm:$0xff] %v1796
    %1805 = vst [vmem:[#allocation10 + $0xc8] sm:$0xff] %v1797
    %1806 = vst [vmem:[#allocation10 + $0x148] sm:$0xff] %v1798
    %1807 = vst [vmem:[#allocation10 + $0x1c8] sm:$0xff] %v1799
    %1808 = vst [vmem:[#allocation10 + $0x248] sm:$0xff] %v1800
    %1809 = vst [vmem:[#allocation10 + $0x2c8] sm:$0xff] %v1801
    %1810 = vst [vmem:[#allocation10 + $0x348] sm:$0xff] %v1802
    %1811 = vst [vmem:[#allocation10 + $0x3c8] sm:$0xff] %v1803
    %v1812 = vmax.f32 %v1557, 0.0
    %v1813 = vmax.f32 %v1558, 0.0
    %v1814 = vmax.f32 %v1559, 0.0
    %v1815 = vmax.f32 %v1561, 0.0
    %v1816 = vmax.f32 %v1562, 0.0
    %v1817 = vmax.f32 %v1563, 0.0
    %v1818 = vmax.f32 %v1565, 0.0
    %v1819 = vmax.f32 %v1566, 0.0
    %v1820 = vmax.f32 %v1567, 0.0
    %v1821 = vmax.f32 %v1569, 0.0
    %v1822 = vmax.f32 %v1570, 0.0
    %v1823 = vmax.f32 %v1571, 0.0
    %v1824 = vmax.f32 %v1573, 0.0
    %v1825 = vmax.f32 %v1574, 0.0
    %v1826 = vmax.f32 %v1575, 0.0
    %v1827 = vmax.f32 %v1577, 0.0
    %v1828 = vmax.f32 %v1578, 0.0
    %v1829 = vmax.f32 %v1579, 0.0
    %v1830 = vmax.f32 %v1581, 0.0
    %v1831 = vmax.f32 %v1582, 0.0
    %v1832 = vmax.f32 %v1583, 0.0
    %v1833 = vmax.f32 %v1585, 0.0
    %v1834 = vmax.f32 %v1586, 0.0
    %v1835 = vmax.f32 %v1587, 0.0
    %1836 = vst [vmem:[#allocation10 + $0x50] sm:$0xff] %v1812
    %1837 = vst [vmem:[#allocation10 + $0x58] sm:$0xff] %v1813
    %1838 = vst [vmem:[#allocation10 + $0x60] sm:$0xff] %v1814
    %1839 = vst [vmem:[#allocation10 + $0xd0] sm:$0xff] %v1815
    %1840 = vst [vmem:[#allocation10 + $0xd8] sm:$0xff] %v1816
    %1841 = vst [vmem:[#allocation10 + $0xe0] sm:$0xff] %v1817
    %1842 = vst [vmem:[#allocation10 + $0x150] sm:$0xff] %v1818
    %1843 = vst [vmem:[#allocation10 + $0x158] sm:$0xff] %v1819
    %1844 = vst [vmem:[#allocation10 + $0x160] sm:$0xff] %v1820
    %1845 = vst [vmem:[#allocation10 + $0x1d0] sm:$0xff] %v1821
    %1846 = vst [vmem:[#allocation10 + $0x1d8] sm:$0xff] %v1822
    %1847 = vst [vmem:[#allocation10 + $0x1e0] sm:$0xff] %v1823
    %1848 = vst [vmem:[#allocation10 + $0x250] sm:$0xff] %v1824
    %1849 = vst [vmem:[#allocation10 + $0x258] sm:$0xff] %v1825
    %1850 = vst [vmem:[#allocation10 + $0x260] sm:$0xff] %v1826
    %1851 = vst [vmem:[#allocation10 + $0x2d0] sm:$0xff] %v1827
    %1852 = vst [vmem:[#allocation10 + $0x2d8] sm:$0xff] %v1828
    %1853 = vst [vmem:[#allocation10 + $0x2e0] sm:$0xff] %v1829
    %1854 = vst [vmem:[#allocation10 + $0x350] sm:$0xff] %v1830
    %1855 = vst [vmem:[#allocation10 + $0x358] sm:$0xff] %v1831
    %1856 = vst [vmem:[#allocation10 + $0x360] sm:$0xff] %v1832
    %1857 = vst [vmem:[#allocation10 + $0x3d0] sm:$0xff] %v1833
    %1858 = vst [vmem:[#allocation10 + $0x3d8] sm:$0xff] %v1834
    %1859 = vst [vmem:[#allocation10 + $0x3e0] sm:$0xff] %v1835
    %1860 = vst [vmem:[#allocation10 + $0x68] sm:$0xff] 0.0
    %1861 = vst [vmem:[#allocation10 + $0x70] sm:$0xff] 0.0
    %1862 = vst [vmem:[#allocation10 + $0x78] sm:$0xff] 0.0
    %1863 = vst [vmem:[#allocation10 + $0xe8] sm:$0xff] 0.0
    %1864 = vst [vmem:[#allocation10 + $0xf0] sm:$0xff] 0.0
    %1865 = vst [vmem:[#allocation10 + $0xf8] sm:$0xff] 0.0
    %1866 = vst [vmem:[#allocation10 + $0x168] sm:$0xff] 0.0
    %1867 = vst [vmem:[#allocation10 + $0x170] sm:$0xff] 0.0
    %1868 = vst [vmem:[#allocation10 + $0x178] sm:$0xff] 0.0
    %1869 = vst [vmem:[#allocation10 + $0x1e8] sm:$0xff] 0.0
    %1870 = vst [vmem:[#allocation10 + $0x1f0] sm:$0xff] 0.0
    %1871 = vst [vmem:[#allocation10 + $0x1f8] sm:$0xff] 0.0
    %1872 = vst [vmem:[#allocation10 + $0x268] sm:$0xff] 0.0
    %1873 = vst [vmem:[#allocation10 + $0x270] sm:$0xff] 0.0
    %1874 = vst [vmem:[#allocation10 + $0x278] sm:$0xff] 0.0
    %1875 = vst [vmem:[#allocation10 + $0x2e8] sm:$0xff] 0.0
    %1876 = vst [vmem:[#allocation10 + $0x2f0] sm:$0xff] 0.0
    %1877 = vst [vmem:[#allocation10 + $0x2f8] sm:$0xff] 0.0
    %1878 = vst [vmem:[#allocation10 + $0x368] sm:$0xff] 0.0
    %1879 = vst [vmem:[#allocation10 + $0x370] sm:$0xff] 0.0
    %1880 = vst [vmem:[#allocation10 + $0x378] sm:$0xff] 0.0
    %1881 = vst [vmem:[#allocation10 + $0x3e8] sm:$0xff] 0.0
    %1882 = vst [vmem:[#allocation10 + $0x3f0] sm:$0xff] 0.0
    %1883 = vst [vmem:[#allocation10 + $0x3f8] sm:$0xff] 0.0
    // Predicated region
    $region34: #{tpu_custom_call.1} parent=1 // pred_check
      _
    $region35: #{tpu_custom_call.1} parent=1 // pred_check_branch
      %1885 = sbr.rel (0) target = $region37
    $region36: #{tpu_custom_call.1} parent=1 // pred_region
      %s1887 = ssub.s32 16384, 16384
      %1888 = vsyncadd [#allocation4], %s1887
      %s1889 = sshll.u32 [#allocation10], 4
      %s1890 = int_to_ptr.vmem [resolvable:$true] %s1889
      %1895 = dma.vmem_to_hbm [thread:$0]  %s1890, 16384, %s4, [#allocation4], 128, 128, 8
    $region37: #{tpu_custom_call.1} parent=1 // pred_fallthru
      _
    // Predicated region
    $region38: #{tpu_custom_call.1} parent=1 // pred_check
      _
    $region39: #{tpu_custom_call.1} parent=1 // pred_check_branch
      %1897 = sbr.rel (0) target = $region41
    $region40: #{tpu_custom_call.1} parent=1 // pred_region
      %1898 = dma.done [#allocation4], 16384
    $region41: #{tpu_custom_call.1} parent=1 // pred_fallthru
      _
    %1899 = vsyncpa [#allocation3], 1
    %1900 = vsyncpa [#allocation6], 1
    %1901 = vsyncpa [#allocation9], 1
    %1902 = vsyncpa [#allocation4], 1

</llo_original>
